<compile_context>
chip_gen: v7x
topology: tpu7x:2x2x1
jax: 0.10.0
libtpu: 0.0.40
codegen_flags: <defaults>
</compile_context>

<pallas_src>
import functools

import jax
import jax.numpy as jnp
import numpy as np
from jax import lax
from jax.experimental import pallas as pl
from jax.experimental.pallas import tpu as pltpu

EMBED_DIM = 16
HIDDEN_DIM = 32        # 2H = 64 fwd-state lanes, 8H = 256 fwd-gate lanes
LABEL_SIZE = 5
BATCH = 2
BATCH_PAD = 8          # sublane granularity
SEQ_LEN = 8


# ----------------------------- Pallas kernel ------------------------------- #

def _fused_bilstm_kernel(s1_ref, s2_ref, wih1_ref, wih2_ref, whh_ref, b_ref,
                         h0_ref, c0_ref, wl_ref, bl_ref, o_ref,
                         x1p_ref, x2p_ref, gx_ref, *, T, B, BP, H):
    """Fused BiLSTM(s1) + BiLSTM(s2) + Linear + log_softmax.

    s1/s2    : (T, B, E)     raw sentences (no wrapper-side packing)
    wih1/2   : (E, 16H)      input weights for sentence 1 / 2; columns
                             [ fwd 8H | rev 8H ], gate order [i|f|o|g],
                             each gate = [lstm_1 block | lstm_2 block]
    whh      : (4H, 16H)     recurrent weights, rows [s1f | s2f | s1r | s2r]
    b        : (1, 16H)      combined bias (b_ih + b_hh)
    h0/c0    : (BP, 4H)      padded initial states [s1f | s2f | s1r | s2r]
    wl       : (4H, L)       hidden2label rows reordered to [fwd 2H | rev 2H]
    bl       : (1, L)
    o        : (B, L)        log_probs
    scratch  : x1p/x2p (T*BP, E) padded inputs; gx (T*BP, 8H) fwd projection
    """
    H2, H6, H8 = 2 * H, 6 * H, 8 * H
    f32 = jnp.float32

    # ---- in-kernel input packing: pad batch B -> BP (sublane aligned) ------
    x1p_ref[...] = jnp.zeros_like(x1p_ref)
    x2p_ref[...] = jnp.zeros_like(x2p_ref)
    for t in range(T):                               # T static -> unrolled
        x1p_ref[t * BP:t * BP + B, :] = s1_ref[t]
        x2p_ref[t * BP:t * BP + B, :] = s2_ref[t]

    # ---- hoisted input projection, forward blocks only (all timesteps) -----
    gx_ref[...] = (
        jnp.dot(x1p_ref[...], wih1_ref[:, :H8], preferred_element_type=f32)
        + jnp.dot(x2p_ref[...], wih2_ref[:, :H8], preferred_element_type=f32)
        + b_ref[:, :H8])

    def act(gates):
        # sigmoid(x) == 0.5*(tanh(0.5*x)+1): single EUP op on the serial chain
        sg = 0.5 * jnp.tanh(0.5 * gates[:, :H6]) + 0.5        # [ i | f | o ]
        g = jnp.tanh(gates[:, H6:])
        return sg[:, :H2], sg[:, H2:2 * H2], sg[:, 2 * H2:H6], g

    # ---- reverse directions: ONE cell step on x[T-1] from (h0_rev, c0_rev) --
    xl1 = x1p_ref[(T - 1) * BP:T * BP, :]
    xl2 = x2p_ref[(T - 1) * BP:T * BP, :]
    gr = (jnp.dot(xl1, wih1_ref[:, H8:], preferred_element_type=f32)
          + jnp.dot(xl2, wih2_ref[:, H8:], preferred_element_type=f32)
          + b_ref[:, H8:]
          + jnp.dot(h0_ref[:, H2:], whh_ref[H2:, H8:],
                    preferred_element_type=f32))
    ir, fr, orr, grg = act(gr)
    cr = fr * c0_ref[:, H2:] + ir * grg
    h_rev = orr * jnp.tanh(cr)                 # (BP, 2H) rev part of lstm_out[-1]

    # ---- forward directions: T-step recurrence at half width ---------------
    whh_f = whh_ref[:H2, :H8]                  # (2H, 8H), hoisted out of the loop
    hf = h0_ref[:, :H2]
    cf = c0_ref[:, :H2]
    for t in range(T):                         # fully unrolled; h/c live in vregs
        gf = gx_ref[t * BP:(t + 1) * BP, :] + jnp.dot(
            hf, whh_f, preferred_element_type=f32)           # (BP, 8H)
        i, f, o, g = act(gf)
        cf = f * cf + i * g
        hf = o * jnp.tanh(cf)

    # ---- hidden2label + log_softmax (only what forward() returns) ----------
    y = (jnp.dot(hf, wl_ref[:H2, :], preferred_element_type=f32)
         + jnp.dot(h_rev, wl_ref[H2:, :], preferred_element_type=f32)
         + bl_ref[...])
    m = jnp.max(y, axis=-1, keepdims=True)
    lse = m + jnp.log(jnp.sum(jnp.exp(y - m), axis=-1, keepdims=True))
    o_ref[...] = (y - lse)[:B]


# ------------------------------ JAX wrapper -------------------------------- #

_VMEM_SPEC = pl.BlockSpec(memory_space=pltpu.MemorySpace.VMEM)


@jax.jit
def bilstm_forward_fused(fused, sentence_1, sentence_2):
    """Equivalent of BiLSTM.forward(sentence_1, sentence_2) -> log_probs."""
    T, B, E = sentence_1.shape
    BP = fused["h0"].shape[0]
    H = fused["whh"].shape[0] // 4
    L = fused["wl"].shape[1]

    kernel = functools.partial(_fused_bilstm_kernel, T=T, B=B, BP=BP, H=H)
    return pl.pallas_call(
        kernel,
        out_shape=jax.ShapeDtypeStruct((B, L), jnp.float32),
        in_specs=[_VMEM_SPEC] * 10,
        out_specs=_VMEM_SPEC,
        scratch_shapes=[
            pltpu.VMEM((T * BP, E), jnp.float32),       # padded sentence_1
            pltpu.VMEM((T * BP, E), jnp.float32),       # padded sentence_2
            pltpu.VMEM((T * BP, 8 * H), jnp.float32),   # fwd-block input projection
        ],
    )(sentence_1, sentence_2, fused["wih1"], fused["wih2"], fused["whh"],
      fused["bias"], fused["h0"], fused["c0"], fused["wl"], fused["bl"])


def pack_fused_params(params, batch_pad=BATCH_PAD):
    """One-time host-side packing into the kernel's block-structured layout.

    16H gate columns = [ fwd 8H | rev 8H ]; within each half gates are ordered
    [i | f | o | g] (each 2H) and within a gate the sub-blocks are
    [lstm_1 | lstm_2] (each H).  wih1/wih2 carry sentence_1 / sentence_2 input
    weights (the other LSTM's columns stay zero).  whh / h0 / c0 row & column
    blocks follow the packed state layout [s1_fwd | s2_fwd | s1_rev | s2_rev].
    """
    H, E = HIDDEN_DIM, EMBED_DIM
    w1, w2 = params["lstm_1"], params["lstm_2"]

    # (sentence index, W_ih, W_hh, bias) in packed block order k = 0..3
    blocks = [(0, w1[0], w1[1], w1[2]),   # lstm_1 forward
              (1, w2[0], w2[1], w2[2]),   # lstm_2 forward
              (0, w1[3], w1[4], w1[5]),   # lstm_1 reverse
              (1, w2[3], w2[4], w2[5])]   # lstm_2 reverse
    src_for_dest = (0, 1, 3, 2)           # stored [i,f,g,o] -> packed [i,f,o,g]

    wih = [np.zeros((E, 16 * H), np.float32) for _ in range(2)]
    whh = np.zeros((4 * H, 16 * H), np.float32)
    bias = np.zeros((1, 16 * H), np.float32)
    for k, (sent, w_ih, w_hh, b) in enumerate(blocks):
        half = 0 if k < 2 else 8 * H      # fwd blocks first, rev blocks second
        sub = (k % 2) * H                 # lstm_1 | lstm_2 sub-block within a gate
        for d, s in enumerate(src_for_dest):
            col = half + d * 2 * H + sub
            wih[sent][:, col:col + H] = np.asarray(w_ih[:, s * H:(s + 1) * H])
            whh[k * H:(k + 1) * H, col:col + H] = np.asarray(w_hh[:, s * H:(s + 1) * H])
            bias[:, col:col + H] = np.asarray(b[:, s * H:(s + 1) * H])

    def pack_state(a1, a2):
        a1, a2 = np.asarray(a1), np.asarray(a2)
        bsz = a1.shape[1]
        s = np.zeros((batch_pad, 4 * H), np.float32)
        s[:bsz, 0 * H:1 * H] = a1[0]      # lstm_1 fwd
        s[:bsz, 1 * H:2 * H] = a2[0]      # lstm_2 fwd
        s[:bsz, 2 * H:3 * H] = a1[1]      # lstm_1 rev
        s[:bsz, 3 * H:4 * H] = a2[1]      # lstm_2 rev
        return s

    # hidden2label rows reordered from [1f|1r|2f|2r] to [1f|2f|1r|2r]
    wl_src = np.asarray(params["w_label"])
    wl = np.concatenate([wl_src[0:H], wl_src[2 * H:3 * H],
                         wl_src[H:2 * H], wl_src[3 * H:4 * H]], axis=0)

    return {
        "wih1": jnp.asarray(wih[0]), "wih2": jnp.asarray(wih[1]),
        "whh": jnp.asarray(whh), "bias": jnp.asarray(bias),
        "h0": jnp.asarray(pack_state(params["h0_1"], params["h0_2"])),
        "c0": jnp.asarray(pack_state(params["c0_1"], params["c0_2"])),
        "wl": jnp.asarray(wl), "bl": jnp.asarray(params["b_label"]),
    }


# --------------------------- pure-JAX reference ---------------------------- #

def _lstm_dir_ref(x, w_ih, w_hh, b, h0, c0, reverse):
    H = w_hh.shape[0]
    xs = x[::-1] if reverse else x

    def cell(carry, xt):
        h, c = carry
        gates = xt @ w_ih + h @ w_hh + b
        i = jax.nn.sigmoid(gates[:, 0 * H:1 * H])
        f = jax.nn.sigmoid(gates[:, 1 * H:2 * H])
        g = jnp.tanh(gates[:, 2 * H:3 * H])
        o = jax.nn.sigmoid(gates[:, 3 * H:4 * H])
        c = f * c + i * g
        h = o * jnp.tanh(c)
        return (h, c), h

    _, hs = lax.scan(cell, (h0, c0), xs)
    return hs[::-1] if reverse else hs


def bilstm_forward_ref(params, s1, s2):
    def bilstm(x, weights, h0, c0):
        w_ih_f, w_hh_f, b_f, w_ih_r, w_hh_r, b_r = weights
        fwd = _lstm_dir_ref(x, w_ih_f, w_hh_f, b_f, h0[0], c0[0], False)
        rev = _lstm_dir_ref(x, w_ih_r, w_hh_r, b_r, h0[1], c0[1], True)
        return jnp.concatenate([fwd, rev], axis=-1)

    o1 = bilstm(s1, params["lstm_1"], params["h0_1"], params["c0_1"])
    o2 = bilstm(s2, params["lstm_2"], params["h0_2"], params["c0_2"])
    temp = jnp.concatenate([o1[-1], o2[-1]], axis=1)
    y = temp @ params["w_label"] + params["b_label"]
    return jax.nn.log_softmax(y, axis=-1)


# ------------------------------ param builder ------------------------------ #

def init_params(key, embedding_dim, hidden_dim, label_size, batch_size):
    H = hidden_dim
    k = 1.0 / np.sqrt(H)
    # 6 weights per LSTM * 2 LSTMs + 4 initial states + 2 label params = 18 keys
    keys = jax.random.split(key, 18)
    it = iter(keys)

    def u(shape):
        return jax.random.uniform(next(it), shape, jnp.float32, -k, k)

    def lstm_weights():
        # per direction: W_ih (E, 4H), W_hh (H, 4H), combined bias (1, 4H)
        # gate column order [i, f, g, o] (PyTorch convention)
        return (u((embedding_dim, 4 * H)), u((H, 4 * H)), u((1, 4 * H)),
                u((embedding_dim, 4 * H)), u((H, 4 * H)), u((1, 4 * H)))

    params = {
        "lstm_1": lstm_weights(),
        "lstm_2": lstm_weights(),
        # init_hidden_1 / init_hidden_2: randn(2, batch, hidden)
        "h0_1": jax.random.normal(next(it), (2, batch_size, H), jnp.float32),
        "c0_1": jax.random.normal(next(it), (2, batch_size, H), jnp.float32),
        "h0_2": jax.random.normal(next(it), (2, batch_size, H), jnp.float32),
        "c0_2": jax.random.normal(next(it), (2, batch_size, H), jnp.float32),
        # hidden2label: Linear(4H, label_size), stored transposed (4H, L)
        "w_label": u((4 * H, label_size)),
        "b_label": u((1, label_size)),
    }
    return params


# ---------------------------------- main ----------------------------------- #

if __name__ == "__main__":
    root = jax.random.PRNGKey(0)
    kp, ks1, ks2 = jax.random.split(root, 3)

    params = init_params(kp, EMBED_DIM, HIDDEN_DIM, LABEL_SIZE, BATCH)

    # sentence_1 / sentence_2 are fed straight to the LSTMs -> (T, B, E) floats
    sentence_1 = jax.random.normal(ks1, (SEQ_LEN, BATCH, EMBED_DIM), jnp.float32)
    sentence_2 = jax.random.normal(ks2, (SEQ_LEN, BATCH, EMBED_DIM), jnp.float32)

    fused = pack_fused_params(params)            # one-time host-side packing
    log_probs = bilstm_forward_fused(fused, sentence_1, sentence_2)
    log_probs = jax.block_until_ready(log_probs)

    ref = bilstm_forward_ref(params, sentence_1, sentence_2)
    np.testing.assert_allclose(np.asarray(log_probs), np.asarray(ref),
                               rtol=1e-4, atol=1e-4)

    assert log_probs.shape == (BATCH, LABEL_SIZE)
    print("KERNEL_OK")
</pallas_src>

<mosaic_0001>
module attributes {stable_mosaic.version = 11 : i64} {
  func.func @_fused_bilstm_kernel(%arg0: memref<8x2x16xf32, #tpu.memory_space<vmem>>, %arg1: memref<8x2x16xf32, #tpu.memory_space<vmem>>, %arg2: memref<16x512xf32, #tpu.memory_space<vmem>>, %arg3: memref<16x512xf32, #tpu.memory_space<vmem>>, %arg4: memref<128x512xf32, #tpu.memory_space<vmem>>, %arg5: memref<1x512xf32, #tpu.memory_space<vmem>>, %arg6: memref<8x128xf32, #tpu.memory_space<vmem>>, %arg7: memref<8x128xf32, #tpu.memory_space<vmem>>, %arg8: memref<128x5xf32, #tpu.memory_space<vmem>>, %arg9: memref<1x5xf32, #tpu.memory_space<vmem>>, %arg10: memref<2x5xf32, #tpu.memory_space<vmem>>, %arg11: memref<64x16xf32, #tpu.memory_space<vmem>>, %arg12: memref<64x16xf32, #tpu.memory_space<vmem>>, %arg13: memref<64x256xf32, #tpu.memory_space<vmem>>) attributes {dimension_semantics = [], scalar_prefetch = 0 : i64, scratch_operands = 3 : i64, tpu.core_type = #tpu.core_type<tc>} {
    %cst = arith.constant 0.000000e+00 : f32
    %0 = vector.broadcast %cst : f32 to vector<64x16xf32>
    %c0 = arith.constant 0 : index
    %c0_0 = arith.constant 0 : index
    %1 = vector.load %arg11[%c0, %c0_0] : memref<64x16xf32, #tpu.memory_space<vmem>>, vector<64x16xf32>
    tpu.vector_store %arg11[%c0, %c0_0], %0 {strides = array<i32>} : memref<64x16xf32, #tpu.memory_space<vmem>>, vector<64x16xf32>,
    %cst_1 = arith.constant 0.000000e+00 : f32
    %2 = vector.broadcast %cst_1 : f32 to vector<64x16xf32>
    %c0_2 = arith.constant 0 : index
    %c0_3 = arith.constant 0 : index
    %3 = vector.load %arg12[%c0_2, %c0_3] : memref<64x16xf32, #tpu.memory_space<vmem>>, vector<64x16xf32>
    tpu.vector_store %arg12[%c0_2, %c0_3], %2 {strides = array<i32>} : memref<64x16xf32, #tpu.memory_space<vmem>>, vector<64x16xf32>,
    %c0_4 = arith.constant 0 : index
    %c0_5 = arith.constant 0 : index
    %c0_6 = arith.constant 0 : index
    %4 = vector.load %arg0[%c0_4, %c0_5, %c0_6] : memref<8x2x16xf32, #tpu.memory_space<vmem>>, vector<1x2x16xf32>
    %5 = vector.shape_cast %4 : vector<1x2x16xf32> to vector<2x16xf32>
    %c0_7 = arith.constant 0 : index
    %c0_8 = arith.constant 0 : index
    %6 = vector.load %arg11[%c0_7, %c0_8] : memref<64x16xf32, #tpu.memory_space<vmem>>, vector<2x16xf32>
    tpu.vector_store %arg11[%c0_7, %c0_8], %5 {strides = array<i32>} : memref<64x16xf32, #tpu.memory_space<vmem>>, vector<2x16xf32>,
    %c0_9 = arith.constant 0 : index
    %c0_10 = arith.constant 0 : index
    %c0_11 = arith.constant 0 : index
    %7 = vector.load %arg1[%c0_9, %c0_10, %c0_11] : memref<8x2x16xf32, #tpu.memory_space<vmem>>, vector<1x2x16xf32>
    %8 = vector.shape_cast %7 : vector<1x2x16xf32> to vector<2x16xf32>
    %c0_12 = arith.constant 0 : index
    %c0_13 = arith.constant 0 : index
    %9 = vector.load %arg12[%c0_12, %c0_13] : memref<64x16xf32, #tpu.memory_space<vmem>>, vector<2x16xf32>
    tpu.vector_store %arg12[%c0_12, %c0_13], %8 {strides = array<i32>} : memref<64x16xf32, #tpu.memory_space<vmem>>, vector<2x16xf32>,
    %c1 = arith.constant 1 : index
    %c0_14 = arith.constant 0 : index
    %c0_15 = arith.constant 0 : index
    %10 = vector.load %arg0[%c1, %c0_14, %c0_15] : memref<8x2x16xf32, #tpu.memory_space<vmem>>, vector<1x2x16xf32>
    %11 = vector.shape_cast %10 : vector<1x2x16xf32> to vector<2x16xf32>
    %c8 = arith.constant 8 : index
    %c0_16 = arith.constant 0 : index
    %12 = vector.load %arg11[%c8, %c0_16] : memref<64x16xf32, #tpu.memory_space<vmem>>, vector<2x16xf32>
    tpu.vector_store %arg11[%c8, %c0_16], %11 {strides = array<i32>} : memref<64x16xf32, #tpu.memory_space<vmem>>, vector<2x16xf32>,
    %c1_17 = arith.constant 1 : index
    %c0_18 = arith.constant 0 : index
    %c0_19 = arith.constant 0 : index
    %13 = vector.load %arg1[%c1_17, %c0_18, %c0_19] : memref<8x2x16xf32, #tpu.memory_space<vmem>>, vector<1x2x16xf32>
    %14 = vector.shape_cast %13 : vector<1x2x16xf32> to vector<2x16xf32>
    %c8_20 = arith.constant 8 : index
    %c0_21 = arith.constant 0 : index
    %15 = vector.load %arg12[%c8_20, %c0_21] : memref<64x16xf32, #tpu.memory_space<vmem>>, vector<2x16xf32>
    tpu.vector_store %arg12[%c8_20, %c0_21], %14 {strides = array<i32>} : memref<64x16xf32, #tpu.memory_space<vmem>>, vector<2x16xf32>,
    %c2 = arith.constant 2 : index
    %c0_22 = arith.constant 0 : index
    %c0_23 = arith.constant 0 : index
    %16 = vector.load %arg0[%c2, %c0_22, %c0_23] : memref<8x2x16xf32, #tpu.memory_space<vmem>>, vector<1x2x16xf32>
    %17 = vector.shape_cast %16 : vector<1x2x16xf32> to vector<2x16xf32>
    %c16 = arith.constant 16 : index
    %c0_24 = arith.constant 0 : index
    %18 = vector.load %arg11[%c16, %c0_24] : memref<64x16xf32, #tpu.memory_space<vmem>>, vector<2x16xf32>
    tpu.vector_store %arg11[%c16, %c0_24], %17 {strides = array<i32>} : memref<64x16xf32, #tpu.memory_space<vmem>>, vector<2x16xf32>,
    %c2_25 = arith.constant 2 : index
    %c0_26 = arith.constant 0 : index
    %c0_27 = arith.constant 0 : index
    %19 = vector.load %arg1[%c2_25, %c0_26, %c0_27] : memref<8x2x16xf32, #tpu.memory_space<vmem>>, vector<1x2x16xf32>
    %20 = vector.shape_cast %19 : vector<1x2x16xf32> to vector<2x16xf32>
    %c16_28 = arith.constant 16 : index
    %c0_29 = arith.constant 0 : index
    %21 = vector.load %arg12[%c16_28, %c0_29] : memref<64x16xf32, #tpu.memory_space<vmem>>, vector<2x16xf32>
    tpu.vector_store %arg12[%c16_28, %c0_29], %20 {strides = array<i32>} : memref<64x16xf32, #tpu.memory_space<vmem>>, vector<2x16xf32>,
    %c3 = arith.constant 3 : index
    %c0_30 = arith.constant 0 : index
    %c0_31 = arith.constant 0 : index
    %22 = vector.load %arg0[%c3, %c0_30, %c0_31] : memref<8x2x16xf32, #tpu.memory_space<vmem>>, vector<1x2x16xf32>
    %23 = vector.shape_cast %22 : vector<1x2x16xf32> to vector<2x16xf32>
    %c24 = arith.constant 24 : index
    %c0_32 = arith.constant 0 : index
    %24 = vector.load %arg11[%c24, %c0_32] : memref<64x16xf32, #tpu.memory_space<vmem>>, vector<2x16xf32>
    tpu.vector_store %arg11[%c24, %c0_32], %23 {strides = array<i32>} : memref<64x16xf32, #tpu.memory_space<vmem>>, vector<2x16xf32>,
    %c3_33 = arith.constant 3 : index
    %c0_34 = arith.constant 0 : index
    %c0_35 = arith.constant 0 : index
    %25 = vector.load %arg1[%c3_33, %c0_34, %c0_35] : memref<8x2x16xf32, #tpu.memory_space<vmem>>, vector<1x2x16xf32>
    %26 = vector.shape_cast %25 : vector<1x2x16xf32> to vector<2x16xf32>
    %c24_36 = arith.constant 24 : index
    %c0_37 = arith.constant 0 : index
    %27 = vector.load %arg12[%c24_36, %c0_37] : memref<64x16xf32, #tpu.memory_space<vmem>>, vector<2x16xf32>
    tpu.vector_store %arg12[%c24_36, %c0_37], %26 {strides = array<i32>} : memref<64x16xf32, #tpu.memory_space<vmem>>, vector<2x16xf32>,
    %c4 = arith.constant 4 : index
    %c0_38 = arith.constant 0 : index
    %c0_39 = arith.constant 0 : index
    %28 = vector.load %arg0[%c4, %c0_38, %c0_39] : memref<8x2x16xf32, #tpu.memory_space<vmem>>, vector<1x2x16xf32>
    %29 = vector.shape_cast %28 : vector<1x2x16xf32> to vector<2x16xf32>
    %c32 = arith.constant 32 : index
    %c0_40 = arith.constant 0 : index
    %30 = vector.load %arg11[%c32, %c0_40] : memref<64x16xf32, #tpu.memory_space<vmem>>, vector<2x16xf32>
    tpu.vector_store %arg11[%c32, %c0_40], %29 {strides = array<i32>} : memref<64x16xf32, #tpu.memory_space<vmem>>, vector<2x16xf32>,
    %c4_41 = arith.constant 4 : index
    %c0_42 = arith.constant 0 : index
    %c0_43 = arith.constant 0 : index
    %31 = vector.load %arg1[%c4_41, %c0_42, %c0_43] : memref<8x2x16xf32, #tpu.memory_space<vmem>>, vector<1x2x16xf32>
    %32 = vector.shape_cast %31 : vector<1x2x16xf32> to vector<2x16xf32>
    %c32_44 = arith.constant 32 : index
    %c0_45 = arith.constant 0 : index
    %33 = vector.load %arg12[%c32_44, %c0_45] : memref<64x16xf32, #tpu.memory_space<vmem>>, vector<2x16xf32>
    tpu.vector_store %arg12[%c32_44, %c0_45], %32 {strides = array<i32>} : memref<64x16xf32, #tpu.memory_space<vmem>>, vector<2x16xf32>,
    %c5 = arith.constant 5 : index
    %c0_46 = arith.constant 0 : index
    %c0_47 = arith.constant 0 : index
    %34 = vector.load %arg0[%c5, %c0_46, %c0_47] : memref<8x2x16xf32, #tpu.memory_space<vmem>>, vector<1x2x16xf32>
    %35 = vector.shape_cast %34 : vector<1x2x16xf32> to vector<2x16xf32>
    %c40 = arith.constant 40 : index
    %c0_48 = arith.constant 0 : index
    %36 = vector.load %arg11[%c40, %c0_48] : memref<64x16xf32, #tpu.memory_space<vmem>>, vector<2x16xf32>
    tpu.vector_store %arg11[%c40, %c0_48], %35 {strides = array<i32>} : memref<64x16xf32, #tpu.memory_space<vmem>>, vector<2x16xf32>,
    %c5_49 = arith.constant 5 : index
    %c0_50 = arith.constant 0 : index
    %c0_51 = arith.constant 0 : index
    %37 = vector.load %arg1[%c5_49, %c0_50, %c0_51] : memref<8x2x16xf32, #tpu.memory_space<vmem>>, vector<1x2x16xf32>
    %38 = vector.shape_cast %37 : vector<1x2x16xf32> to vector<2x16xf32>
    %c40_52 = arith.constant 40 : index
    %c0_53 = arith.constant 0 : index
    %39 = vector.load %arg12[%c40_52, %c0_53] : memref<64x16xf32, #tpu.memory_space<vmem>>, vector<2x16xf32>
    tpu.vector_store %arg12[%c40_52, %c0_53], %38 {strides = array<i32>} : memref<64x16xf32, #tpu.memory_space<vmem>>, vector<2x16xf32>,
    %c6 = arith.constant 6 : index
    %c0_54 = arith.constant 0 : index
    %c0_55 = arith.constant 0 : index
    %40 = vector.load %arg0[%c6, %c0_54, %c0_55] : memref<8x2x16xf32, #tpu.memory_space<vmem>>, vector<1x2x16xf32>
    %41 = vector.shape_cast %40 : vector<1x2x16xf32> to vector<2x16xf32>
    %c48 = arith.constant 48 : index
    %c0_56 = arith.constant 0 : index
    %42 = vector.load %arg11[%c48, %c0_56] : memref<64x16xf32, #tpu.memory_space<vmem>>, vector<2x16xf32>
    tpu.vector_store %arg11[%c48, %c0_56], %41 {strides = array<i32>} : memref<64x16xf32, #tpu.memory_space<vmem>>, vector<2x16xf32>,
    %c6_57 = arith.constant 6 : index
    %c0_58 = arith.constant 0 : index
    %c0_59 = arith.constant 0 : index
    %43 = vector.load %arg1[%c6_57, %c0_58, %c0_59] : memref<8x2x16xf32, #tpu.memory_space<vmem>>, vector<1x2x16xf32>
    %44 = vector.shape_cast %43 : vector<1x2x16xf32> to vector<2x16xf32>
    %c48_60 = arith.constant 48 : index
    %c0_61 = arith.constant 0 : index
    %45 = vector.load %arg12[%c48_60, %c0_61] : memref<64x16xf32, #tpu.memory_space<vmem>>, vector<2x16xf32>
    tpu.vector_store %arg12[%c48_60, %c0_61], %44 {strides = array<i32>} : memref<64x16xf32, #tpu.memory_space<vmem>>, vector<2x16xf32>,
    %c7 = arith.constant 7 : index
    %c0_62 = arith.constant 0 : index
    %c0_63 = arith.constant 0 : index
    %46 = vector.load %arg0[%c7, %c0_62, %c0_63] : memref<8x2x16xf32, #tpu.memory_space<vmem>>, vector<1x2x16xf32>
    %47 = vector.shape_cast %46 : vector<1x2x16xf32> to vector<2x16xf32>
    %c56 = arith.constant 56 : index
    %c0_64 = arith.constant 0 : index
    %48 = vector.load %arg11[%c56, %c0_64] : memref<64x16xf32, #tpu.memory_space<vmem>>, vector<2x16xf32>
    tpu.vector_store %arg11[%c56, %c0_64], %47 {strides = array<i32>} : memref<64x16xf32, #tpu.memory_space<vmem>>, vector<2x16xf32>,
    %c7_65 = arith.constant 7 : index
    %c0_66 = arith.constant 0 : index
    %c0_67 = arith.constant 0 : index
    %49 = vector.load %arg1[%c7_65, %c0_66, %c0_67] : memref<8x2x16xf32, #tpu.memory_space<vmem>>, vector<1x2x16xf32>
    %50 = vector.shape_cast %49 : vector<1x2x16xf32> to vector<2x16xf32>
    %c56_68 = arith.constant 56 : index
    %c0_69 = arith.constant 0 : index
    %51 = vector.load %arg12[%c56_68, %c0_69] : memref<64x16xf32, #tpu.memory_space<vmem>>, vector<2x16xf32>
    tpu.vector_store %arg12[%c56_68, %c0_69], %50 {strides = array<i32>} : memref<64x16xf32, #tpu.memory_space<vmem>>, vector<2x16xf32>,
    %c0_70 = arith.constant 0 : index
    %c0_71 = arith.constant 0 : index
    %52 = vector.load %arg11[%c0_70, %c0_71] : memref<64x16xf32, #tpu.memory_space<vmem>>, vector<64x16xf32>
    %c0_72 = arith.constant 0 : index
    %c0_73 = arith.constant 0 : index
    %53 = vector.load %arg2[%c0_72, %c0_73] : memref<16x512xf32, #tpu.memory_space<vmem>>, vector<16x256xf32>
    %cst_74 = arith.constant dense<0.000000e+00> : vector<64x256xf32>
    %54 = tpu.matmul %52, %53, %cst_74 {dimension_numbers = #tpu.dot_dimension_numbers<[1], [0], [0], [1], [0, 0, 1, 1], [], []>} : vector<64x16xf32>, vector<16x256xf32>, vector<64x256xf32> -> vector<64x256xf32>
    %c0_75 = arith.constant 0 : index
    %c0_76 = arith.constant 0 : index
    %55 = vector.load %arg12[%c0_75, %c0_76] : memref<64x16xf32, #tpu.memory_space<vmem>>, vector<64x16xf32>
    %c0_77 = arith.constant 0 : index
    %c0_78 = arith.constant 0 : index
    %56 = vector.load %arg3[%c0_77, %c0_78] : memref<16x512xf32, #tpu.memory_space<vmem>>, vector<16x256xf32>
    %cst_79 = arith.constant dense<0.000000e+00> : vector<64x256xf32>
    %57 = tpu.matmul %55, %56, %cst_79 {dimension_numbers = #tpu.dot_dimension_numbers<[1], [0], [0], [1], [0, 0, 1, 1], [], []>} : vector<64x16xf32>, vector<16x256xf32>, vector<64x256xf32> -> vector<64x256xf32>
    %58 = arith.addf %54, %57 : vector<64x256xf32>
    %c0_80 = arith.constant 0 : index
    %c0_81 = arith.constant 0 : index
    %59 = vector.load %arg5[%c0_80, %c0_81] : memref<1x512xf32, #tpu.memory_space<vmem>>, vector<1x256xf32>
    %60 = vector.broadcast %59 : vector<1x256xf32> to vector<64x256xf32>
    %61 = arith.addf %58, %60 : vector<64x256xf32>
    %c0_82 = arith.constant 0 : index
    %c0_83 = arith.constant 0 : index
    %62 = vector.load %arg13[%c0_82, %c0_83] : memref<64x256xf32, #tpu.memory_space<vmem>>, vector<64x256xf32>
    tpu.vector_store %arg13[%c0_82, %c0_83], %61 {strides = array<i32>} : memref<64x256xf32, #tpu.memory_space<vmem>>, vector<64x256xf32>,
    %c56_84 = arith.constant 56 : index
    %c0_85 = arith.constant 0 : index
    %63 = vector.load %arg11[%c56_84, %c0_85] : memref<64x16xf32, #tpu.memory_space<vmem>>, vector<8x16xf32>
    %c56_86 = arith.constant 56 : index
    %c0_87 = arith.constant 0 : index
    %64 = vector.load %arg12[%c56_86, %c0_87] : memref<64x16xf32, #tpu.memory_space<vmem>>, vector<8x16xf32>
    %c0_88 = arith.constant 0 : index
    %c256 = arith.constant 256 : index
    %65 = vector.load %arg2[%c0_88, %c256] : memref<16x512xf32, #tpu.memory_space<vmem>>, vector<16x256xf32>
    %cst_89 = arith.constant dense<0.000000e+00> : vector<8x256xf32>
    %66 = tpu.matmul %63, %65, %cst_89 {dimension_numbers = #tpu.dot_dimension_numbers<[1], [0], [0], [1], [0, 0, 1, 1], [], []>} : vector<8x16xf32>, vector<16x256xf32>, vector<8x256xf32> -> vector<8x256xf32>
    %c0_90 = arith.constant 0 : index
    %c256_91 = arith.constant 256 : index
    %67 = vector.load %arg3[%c0_90, %c256_91] : memref<16x512xf32, #tpu.memory_space<vmem>>, vector<16x256xf32>
    %cst_92 = arith.constant dense<0.000000e+00> : vector<8x256xf32>
    %68 = tpu.matmul %64, %67, %cst_92 {dimension_numbers = #tpu.dot_dimension_numbers<[1], [0], [0], [1], [0, 0, 1, 1], [], []>} : vector<8x16xf32>, vector<16x256xf32>, vector<8x256xf32> -> vector<8x256xf32>
    %69 = arith.addf %66, %68 : vector<8x256xf32>
    %c0_93 = arith.constant 0 : index
    %c256_94 = arith.constant 256 : index
    %70 = vector.load %arg5[%c0_93, %c256_94] : memref<1x512xf32, #tpu.memory_space<vmem>>, vector<1x256xf32>
    %71 = vector.broadcast %70 : vector<1x256xf32> to vector<8x256xf32>
    %72 = arith.addf %69, %71 : vector<8x256xf32>
    %c0_95 = arith.constant 0 : index
    %c64 = arith.constant 64 : index
    %73 = vector.load %arg6[%c0_95, %c64] : memref<8x128xf32, #tpu.memory_space<vmem>>, vector<8x64xf32>
    %c64_96 = arith.constant 64 : index
    %c256_97 = arith.constant 256 : index
    %74 = vector.load %arg4[%c64_96, %c256_97] : memref<128x512xf32, #tpu.memory_space<vmem>>, vector<64x256xf32>
    %cst_98 = arith.constant dense<0.000000e+00> : vector<8x256xf32>
    %75 = tpu.matmul %73, %74, %cst_98 {dimension_numbers = #tpu.dot_dimension_numbers<[1], [0], [0], [1], [0, 0, 1, 1], [], []>} : vector<8x64xf32>, vector<64x256xf32>, vector<8x256xf32> -> vector<8x256xf32>
    %76 = arith.addf %72, %75 : vector<8x256xf32>
    %77 = vector.extract_strided_slice %76 {offsets = [0, 0], sizes = [8, 192], strides = [1, 1]} : vector<8x256xf32> to vector<8x192xf32>
    %cst_99 = arith.constant 5.000000e-01 : f32
    %78 = vector.broadcast %cst_99 : f32 to vector<8x192xf32>
    %79 = arith.mulf %78, %77 : vector<8x192xf32>
    %80 = math.tanh %79 : vector<8x192xf32>
    %cst_100 = arith.constant 5.000000e-01 : f32
    %81 = vector.broadcast %cst_100 : f32 to vector<8x192xf32>
    %82 = arith.mulf %81, %80 : vector<8x192xf32>
    %cst_101 = arith.constant 5.000000e-01 : f32
    %83 = vector.broadcast %cst_101 : f32 to vector<8x192xf32>
    %84 = arith.addf %82, %83 : vector<8x192xf32>
    %85 = vector.extract_strided_slice %76 {offsets = [0, 192], sizes = [8, 64], strides = [1, 1]} : vector<8x256xf32> to vector<8x64xf32>
    %86 = math.tanh %85 : vector<8x64xf32>
    %87 = vector.extract_strided_slice %84 {offsets = [0, 0], sizes = [8, 64], strides = [1, 1]} : vector<8x192xf32> to vector<8x64xf32>
    %88 = vector.extract_strided_slice %84 {offsets = [0, 64], sizes = [8, 64], strides = [1, 1]} : vector<8x192xf32> to vector<8x64xf32>
    %89 = vector.extract_strided_slice %84 {offsets = [0, 128], sizes = [8, 64], strides = [1, 1]} : vector<8x192xf32> to vector<8x64xf32>
    %c0_102 = arith.constant 0 : index
    %c64_103 = arith.constant 64 : index
    %90 = vector.load %arg7[%c0_102, %c64_103] : memref<8x128xf32, #tpu.memory_space<vmem>>, vector<8x64xf32>
    %91 = arith.mulf %88, %90 : vector<8x64xf32>
    %92 = arith.mulf %87, %86 : vector<8x64xf32>
    %93 = arith.addf %91, %92 : vector<8x64xf32>
    %94 = math.tanh %93 : vector<8x64xf32>
    %95 = arith.mulf %89, %94 : vector<8x64xf32>
    %c0_104 = arith.constant 0 : index
    %c0_105 = arith.constant 0 : index
    %96 = vector.load %arg4[%c0_104, %c0_105] : memref<128x512xf32, #tpu.memory_space<vmem>>, vector<64x256xf32>
    %c0_106 = arith.constant 0 : index
    %c0_107 = arith.constant 0 : index
    %97 = vector.load %arg6[%c0_106, %c0_107] : memref<8x128xf32, #tpu.memory_space<vmem>>, vector<8x64xf32>
    %c0_108 = arith.constant 0 : index
    %c0_109 = arith.constant 0 : index
    %98 = vector.load %arg7[%c0_108, %c0_109] : memref<8x128xf32, #tpu.memory_space<vmem>>, vector<8x64xf32>
    %c0_110 = arith.constant 0 : index
    %c0_111 = arith.constant 0 : index
    %99 = vector.load %arg13[%c0_110, %c0_111] : memref<64x256xf32, #tpu.memory_space<vmem>>, vector<8x256xf32>
    %cst_112 = arith.constant dense<0.000000e+00> : vector<8x256xf32>
    %100 = tpu.matmul %97, %96, %cst_112 {dimension_numbers = #tpu.dot_dimension_numbers<[1], [0], [0], [1], [0, 0, 1, 1], [], []>} : vector<8x64xf32>, vector<64x256xf32>, vector<8x256xf32> -> vector<8x256xf32>
    %101 = arith.addf %99, %100 : vector<8x256xf32>
    %102 = vector.extract_strided_slice %101 {offsets = [0, 0], sizes = [8, 192], strides = [1, 1]} : vector<8x256xf32> to vector<8x192xf32>
    %cst_113 = arith.constant 5.000000e-01 : f32
    %103 = vector.broadcast %cst_113 : f32 to vector<8x192xf32>
    %104 = arith.mulf %103, %102 : vector<8x192xf32>
    %105 = math.tanh %104 : vector<8x192xf32>
    %cst_114 = arith.constant 5.000000e-01 : f32
    %106 = vector.broadcast %cst_114 : f32 to vector<8x192xf32>
    %107 = arith.mulf %106, %105 : vector<8x192xf32>
    %cst_115 = arith.constant 5.000000e-01 : f32
    %108 = vector.broadcast %cst_115 : f32 to vector<8x192xf32>
    %109 = arith.addf %107, %108 : vector<8x192xf32>
    %110 = vector.extract_strided_slice %101 {offsets = [0, 192], sizes = [8, 64], strides = [1, 1]} : vector<8x256xf32> to vector<8x64xf32>
    %111 = math.tanh %110 : vector<8x64xf32>
    %112 = vector.extract_strided_slice %109 {offsets = [0, 0], sizes = [8, 64], strides = [1, 1]} : vector<8x192xf32> to vector<8x64xf32>
    %113 = vector.extract_strided_slice %109 {offsets = [0, 64], sizes = [8, 64], strides = [1, 1]} : vector<8x192xf32> to vector<8x64xf32>
    %114 = vector.extract_strided_slice %109 {offsets = [0, 128], sizes = [8, 64], strides = [1, 1]} : vector<8x192xf32> to vector<8x64xf32>
    %115 = arith.mulf %113, %98 : vector<8x64xf32>
    %116 = arith.mulf %112, %111 : vector<8x64xf32>
    %117 = arith.addf %115, %116 : vector<8x64xf32>
    %118 = math.tanh %117 : vector<8x64xf32>
    %119 = arith.mulf %114, %118 : vector<8x64xf32>
    %c8_116 = arith.constant 8 : index
    %c0_117 = arith.constant 0 : index
    %120 = vector.load %arg13[%c8_116, %c0_117] : memref<64x256xf32, #tpu.memory_space<vmem>>, vector<8x256xf32>
    %cst_118 = arith.constant dense<0.000000e+00> : vector<8x256xf32>
    %121 = tpu.matmul %119, %96, %cst_118 {dimension_numbers = #tpu.dot_dimension_numbers<[1], [0], [0], [1], [0, 0, 1, 1], [], []>} : vector<8x64xf32>, vector<64x256xf32>, vector<8x256xf32> -> vector<8x256xf32>
    %122 = arith.addf %120, %121 : vector<8x256xf32>
    %123 = vector.extract_strided_slice %122 {offsets = [0, 0], sizes = [8, 192], strides = [1, 1]} : vector<8x256xf32> to vector<8x192xf32>
    %cst_119 = arith.constant 5.000000e-01 : f32
    %124 = vector.broadcast %cst_119 : f32 to vector<8x192xf32>
    %125 = arith.mulf %124, %123 : vector<8x192xf32>
    %126 = math.tanh %125 : vector<8x192xf32>
    %cst_120 = arith.constant 5.000000e-01 : f32
    %127 = vector.broadcast %cst_120 : f32 to vector<8x192xf32>
    %128 = arith.mulf %127, %126 : vector<8x192xf32>
    %cst_121 = arith.constant 5.000000e-01 : f32
    %129 = vector.broadcast %cst_121 : f32 to vector<8x192xf32>
    %130 = arith.addf %128, %129 : vector<8x192xf32>
    %131 = vector.extract_strided_slice %122 {offsets = [0, 192], sizes = [8, 64], strides = [1, 1]} : vector<8x256xf32> to vector<8x64xf32>
    %132 = math.tanh %131 : vector<8x64xf32>
    %133 = vector.extract_strided_slice %130 {offsets = [0, 0], sizes = [8, 64], strides = [1, 1]} : vector<8x192xf32> to vector<8x64xf32>
    %134 = vector.extract_strided_slice %130 {offsets = [0, 64], sizes = [8, 64], strides = [1, 1]} : vector<8x192xf32> to vector<8x64xf32>
    %135 = vector.extract_strided_slice %130 {offsets = [0, 128], sizes = [8, 64], strides = [1, 1]} : vector<8x192xf32> to vector<8x64xf32>
    %136 = arith.mulf %134, %117 : vector<8x64xf32>
    %137 = arith.mulf %133, %132 : vector<8x64xf32>
    %138 = arith.addf %136, %137 : vector<8x64xf32>
    %139 = math.tanh %138 : vector<8x64xf32>
    %140 = arith.mulf %135, %139 : vector<8x64xf32>
    %c16_122 = arith.constant 16 : index
    %c0_123 = arith.constant 0 : index
    %141 = vector.load %arg13[%c16_122, %c0_123] : memref<64x256xf32, #tpu.memory_space<vmem>>, vector<8x256xf32>
    %cst_124 = arith.constant dense<0.000000e+00> : vector<8x256xf32>
    %142 = tpu.matmul %140, %96, %cst_124 {dimension_numbers = #tpu.dot_dimension_numbers<[1], [0], [0], [1], [0, 0, 1, 1], [], []>} : vector<8x64xf32>, vector<64x256xf32>, vector<8x256xf32> -> vector<8x256xf32>
    %143 = arith.addf %141, %142 : vector<8x256xf32>
    %144 = vector.extract_strided_slice %143 {offsets = [0, 0], sizes = [8, 192], strides = [1, 1]} : vector<8x256xf32> to vector<8x192xf32>
    %cst_125 = arith.constant 5.000000e-01 : f32
    %145 = vector.broadcast %cst_125 : f32 to vector<8x192xf32>
    %146 = arith.mulf %145, %144 : vector<8x192xf32>
    %147 = math.tanh %146 : vector<8x192xf32>
    %cst_126 = arith.constant 5.000000e-01 : f32
    %148 = vector.broadcast %cst_126 : f32 to vector<8x192xf32>
    %149 = arith.mulf %148, %147 : vector<8x192xf32>
    %cst_127 = arith.constant 5.000000e-01 : f32
    %150 = vector.broadcast %cst_127 : f32 to vector<8x192xf32>
    %151 = arith.addf %149, %150 : vector<8x192xf32>
    %152 = vector.extract_strided_slice %143 {offsets = [0, 192], sizes = [8, 64], strides = [1, 1]} : vector<8x256xf32> to vector<8x64xf32>
    %153 = math.tanh %152 : vector<8x64xf32>
    %154 = vector.extract_strided_slice %151 {offsets = [0, 0], sizes = [8, 64], strides = [1, 1]} : vector<8x192xf32> to vector<8x64xf32>
    %155 = vector.extract_strided_slice %151 {offsets = [0, 64], sizes = [8, 64], strides = [1, 1]} : vector<8x192xf32> to vector<8x64xf32>
    %156 = vector.extract_strided_slice %151 {offsets = [0, 128], sizes = [8, 64], strides = [1, 1]} : vector<8x192xf32> to vector<8x64xf32>
    %157 = arith.mulf %155, %138 : vector<8x64xf32>
    %158 = arith.mulf %154, %153 : vector<8x64xf32>
    %159 = arith.addf %157, %158 : vector<8x64xf32>
    %160 = math.tanh %159 : vector<8x64xf32>
    %161 = arith.mulf %156, %160 : vector<8x64xf32>
    %c24_128 = arith.constant 24 : index
    %c0_129 = arith.constant 0 : index
    %162 = vector.load %arg13[%c24_128, %c0_129] : memref<64x256xf32, #tpu.memory_space<vmem>>, vector<8x256xf32>
    %cst_130 = arith.constant dense<0.000000e+00> : vector<8x256xf32>
    %163 = tpu.matmul %161, %96, %cst_130 {dimension_numbers = #tpu.dot_dimension_numbers<[1], [0], [0], [1], [0, 0, 1, 1], [], []>} : vector<8x64xf32>, vector<64x256xf32>, vector<8x256xf32> -> vector<8x256xf32>
    %164 = arith.addf %162, %163 : vector<8x256xf32>
    %165 = vector.extract_strided_slice %164 {offsets = [0, 0], sizes = [8, 192], strides = [1, 1]} : vector<8x256xf32> to vector<8x192xf32>
    %cst_131 = arith.constant 5.000000e-01 : f32
    %166 = vector.broadcast %cst_131 : f32 to vector<8x192xf32>
    %167 = arith.mulf %166, %165 : vector<8x192xf32>
    %168 = math.tanh %167 : vector<8x192xf32>
    %cst_132 = arith.constant 5.000000e-01 : f32
    %169 = vector.broadcast %cst_132 : f32 to vector<8x192xf32>
    %170 = arith.mulf %169, %168 : vector<8x192xf32>
    %cst_133 = arith.constant 5.000000e-01 : f32
    %171 = vector.broadcast %cst_133 : f32 to vector<8x192xf32>
    %172 = arith.addf %170, %171 : vector<8x192xf32>
    %173 = vector.extract_strided_slice %164 {offsets = [0, 192], sizes = [8, 64], strides = [1, 1]} : vector<8x256xf32> to vector<8x64xf32>
    %174 = math.tanh %173 : vector<8x64xf32>
    %175 = vector.extract_strided_slice %172 {offsets = [0, 0], sizes = [8, 64], strides = [1, 1]} : vector<8x192xf32> to vector<8x64xf32>
    %176 = vector.extract_strided_slice %172 {offsets = [0, 64], sizes = [8, 64], strides = [1, 1]} : vector<8x192xf32> to vector<8x64xf32>
    %177 = vector.extract_strided_slice %172 {offsets = [0, 128], sizes = [8, 64], strides = [1, 1]} : vector<8x192xf32> to vector<8x64xf32>
    %178 = arith.mulf %176, %159 : vector<8x64xf32>
    %179 = arith.mulf %175, %174 : vector<8x64xf32>
    %180 = arith.addf %178, %179 : vector<8x64xf32>
    %181 = math.tanh %180 : vector<8x64xf32>
    %182 = arith.mulf %177, %181 : vector<8x64xf32>
    %c32_134 = arith.constant 32 : index
    %c0_135 = arith.constant 0 : index
    %183 = vector.load %arg13[%c32_134, %c0_135] : memref<64x256xf32, #tpu.memory_space<vmem>>, vector<8x256xf32>
    %cst_136 = arith.constant dense<0.000000e+00> : vector<8x256xf32>
    %184 = tpu.matmul %182, %96, %cst_136 {dimension_numbers = #tpu.dot_dimension_numbers<[1], [0], [0], [1], [0, 0, 1, 1], [], []>} : vector<8x64xf32>, vector<64x256xf32>, vector<8x256xf32> -> vector<8x256xf32>
    %185 = arith.addf %183, %184 : vector<8x256xf32>
    %186 = vector.extract_strided_slice %185 {offsets = [0, 0], sizes = [8, 192], strides = [1, 1]} : vector<8x256xf32> to vector<8x192xf32>
    %cst_137 = arith.constant 5.000000e-01 : f32
    %187 = vector.broadcast %cst_137 : f32 to vector<8x192xf32>
    %188 = arith.mulf %187, %186 : vector<8x192xf32>
    %189 = math.tanh %188 : vector<8x192xf32>
    %cst_138 = arith.constant 5.000000e-01 : f32
    %190 = vector.broadcast %cst_138 : f32 to vector<8x192xf32>
    %191 = arith.mulf %190, %189 : vector<8x192xf32>
    %cst_139 = arith.constant 5.000000e-01 : f32
    %192 = vector.broadcast %cst_139 : f32 to vector<8x192xf32>
    %193 = arith.addf %191, %192 : vector<8x192xf32>
    %194 = vector.extract_strided_slice %185 {offsets = [0, 192], sizes = [8, 64], strides = [1, 1]} : vector<8x256xf32> to vector<8x64xf32>
    %195 = math.tanh %194 : vector<8x64xf32>
    %196 = vector.extract_strided_slice %193 {offsets = [0, 0], sizes = [8, 64], strides = [1, 1]} : vector<8x192xf32> to vector<8x64xf32>
    %197 = vector.extract_strided_slice %193 {offsets = [0, 64], sizes = [8, 64], strides = [1, 1]} : vector<8x192xf32> to vector<8x64xf32>
    %198 = vector.extract_strided_slice %193 {offsets = [0, 128], sizes = [8, 64], strides = [1, 1]} : vector<8x192xf32> to vector<8x64xf32>
    %199 = arith.mulf %197, %180 : vector<8x64xf32>
    %200 = arith.mulf %196, %195 : vector<8x64xf32>
    %201 = arith.addf %199, %200 : vector<8x64xf32>
    %202 = math.tanh %201 : vector<8x64xf32>
    %203 = arith.mulf %198, %202 : vector<8x64xf32>
    %c40_140 = arith.constant 40 : index
    %c0_141 = arith.constant 0 : index
    %204 = vector.load %arg13[%c40_140, %c0_141] : memref<64x256xf32, #tpu.memory_space<vmem>>, vector<8x256xf32>
    %cst_142 = arith.constant dense<0.000000e+00> : vector<8x256xf32>
    %205 = tpu.matmul %203, %96, %cst_142 {dimension_numbers = #tpu.dot_dimension_numbers<[1], [0], [0], [1], [0, 0, 1, 1], [], []>} : vector<8x64xf32>, vector<64x256xf32>, vector<8x256xf32> -> vector<8x256xf32>
    %206 = arith.addf %204, %205 : vector<8x256xf32>
    %207 = vector.extract_strided_slice %206 {offsets = [0, 0], sizes = [8, 192], strides = [1, 1]} : vector<8x256xf32> to vector<8x192xf32>
    %cst_143 = arith.constant 5.000000e-01 : f32
    %208 = vector.broadcast %cst_143 : f32 to vector<8x192xf32>
    %209 = arith.mulf %208, %207 : vector<8x192xf32>
    %210 = math.tanh %209 : vector<8x192xf32>
    %cst_144 = arith.constant 5.000000e-01 : f32
    %211 = vector.broadcast %cst_144 : f32 to vector<8x192xf32>
    %212 = arith.mulf %211, %210 : vector<8x192xf32>
    %cst_145 = arith.constant 5.000000e-01 : f32
    %213 = vector.broadcast %cst_145 : f32 to vector<8x192xf32>
    %214 = arith.addf %212, %213 : vector<8x192xf32>
    %215 = vector.extract_strided_slice %206 {offsets = [0, 192], sizes = [8, 64], strides = [1, 1]} : vector<8x256xf32> to vector<8x64xf32>
    %216 = math.tanh %215 : vector<8x64xf32>
    %217 = vector.extract_strided_slice %214 {offsets = [0, 0], sizes = [8, 64], strides = [1, 1]} : vector<8x192xf32> to vector<8x64xf32>
    %218 = vector.extract_strided_slice %214 {offsets = [0, 64], sizes = [8, 64], strides = [1, 1]} : vector<8x192xf32> to vector<8x64xf32>
    %219 = vector.extract_strided_slice %214 {offsets = [0, 128], sizes = [8, 64], strides = [1, 1]} : vector<8x192xf32> to vector<8x64xf32>
    %220 = arith.mulf %218, %201 : vector<8x64xf32>
    %221 = arith.mulf %217, %216 : vector<8x64xf32>
    %222 = arith.addf %220, %221 : vector<8x64xf32>
    %223 = math.tanh %222 : vector<8x64xf32>
    %224 = arith.mulf %219, %223 : vector<8x64xf32>
    %c48_146 = arith.constant 48 : index
    %c0_147 = arith.constant 0 : index
    %225 = vector.load %arg13[%c48_146, %c0_147] : memref<64x256xf32, #tpu.memory_space<vmem>>, vector<8x256xf32>
    %cst_148 = arith.constant dense<0.000000e+00> : vector<8x256xf32>
    %226 = tpu.matmul %224, %96, %cst_148 {dimension_numbers = #tpu.dot_dimension_numbers<[1], [0], [0], [1], [0, 0, 1, 1], [], []>} : vector<8x64xf32>, vector<64x256xf32>, vector<8x256xf32> -> vector<8x256xf32>
    %227 = arith.addf %225, %226 : vector<8x256xf32>
    %228 = vector.extract_strided_slice %227 {offsets = [0, 0], sizes = [8, 192], strides = [1, 1]} : vector<8x256xf32> to vector<8x192xf32>
    %cst_149 = arith.constant 5.000000e-01 : f32
    %229 = vector.broadcast %cst_149 : f32 to vector<8x192xf32>
    %230 = arith.mulf %229, %228 : vector<8x192xf32>
    %231 = math.tanh %230 : vector<8x192xf32>
    %cst_150 = arith.constant 5.000000e-01 : f32
    %232 = vector.broadcast %cst_150 : f32 to vector<8x192xf32>
    %233 = arith.mulf %232, %231 : vector<8x192xf32>
    %cst_151 = arith.constant 5.000000e-01 : f32
    %234 = vector.broadcast %cst_151 : f32 to vector<8x192xf32>
    %235 = arith.addf %233, %234 : vector<8x192xf32>
    %236 = vector.extract_strided_slice %227 {offsets = [0, 192], sizes = [8, 64], strides = [1, 1]} : vector<8x256xf32> to vector<8x64xf32>
    %237 = math.tanh %236 : vector<8x64xf32>
    %238 = vector.extract_strided_slice %235 {offsets = [0, 0], sizes = [8, 64], strides = [1, 1]} : vector<8x192xf32> to vector<8x64xf32>
    %239 = vector.extract_strided_slice %235 {offsets = [0, 64], sizes = [8, 64], strides = [1, 1]} : vector<8x192xf32> to vector<8x64xf32>
    %240 = vector.extract_strided_slice %235 {offsets = [0, 128], sizes = [8, 64], strides = [1, 1]} : vector<8x192xf32> to vector<8x64xf32>
    %241 = arith.mulf %239, %222 : vector<8x64xf32>
    %242 = arith.mulf %238, %237 : vector<8x64xf32>
    %243 = arith.addf %241, %242 : vector<8x64xf32>
    %244 = math.tanh %243 : vector<8x64xf32>
    %245 = arith.mulf %240, %244 : vector<8x64xf32>
    %c56_152 = arith.constant 56 : index
    %c0_153 = arith.constant 0 : index
    %246 = vector.load %arg13[%c56_152, %c0_153] : memref<64x256xf32, #tpu.memory_space<vmem>>, vector<8x256xf32>
    %cst_154 = arith.constant dense<0.000000e+00> : vector<8x256xf32>
    %247 = tpu.matmul %245, %96, %cst_154 {dimension_numbers = #tpu.dot_dimension_numbers<[1], [0], [0], [1], [0, 0, 1, 1], [], []>} : vector<8x64xf32>, vector<64x256xf32>, vector<8x256xf32> -> vector<8x256xf32>
    %248 = arith.addf %246, %247 : vector<8x256xf32>
    %249 = vector.extract_strided_slice %248 {offsets = [0, 0], sizes = [8, 192], strides = [1, 1]} : vector<8x256xf32> to vector<8x192xf32>
    %cst_155 = arith.constant 5.000000e-01 : f32
    %250 = vector.broadcast %cst_155 : f32 to vector<8x192xf32>
    %251 = arith.mulf %250, %249 : vector<8x192xf32>
    %252 = math.tanh %251 : vector<8x192xf32>
    %cst_156 = arith.constant 5.000000e-01 : f32
    %253 = vector.broadcast %cst_156 : f32 to vector<8x192xf32>
    %254 = arith.mulf %253, %252 : vector<8x192xf32>
    %cst_157 = arith.constant 5.000000e-01 : f32
    %255 = vector.broadcast %cst_157 : f32 to vector<8x192xf32>
    %256 = arith.addf %254, %255 : vector<8x192xf32>
    %257 = vector.extract_strided_slice %248 {offsets = [0, 192], sizes = [8, 64], strides = [1, 1]} : vector<8x256xf32> to vector<8x64xf32>
    %258 = math.tanh %257 : vector<8x64xf32>
    %259 = vector.extract_strided_slice %256 {offsets = [0, 0], sizes = [8, 64], strides = [1, 1]} : vector<8x192xf32> to vector<8x64xf32>
    %260 = vector.extract_strided_slice %256 {offsets = [0, 64], sizes = [8, 64], strides = [1, 1]} : vector<8x192xf32> to vector<8x64xf32>
    %261 = vector.extract_strided_slice %256 {offsets = [0, 128], sizes = [8, 64], strides = [1, 1]} : vector<8x192xf32> to vector<8x64xf32>
    %262 = arith.mulf %260, %243 : vector<8x64xf32>
    %263 = arith.mulf %259, %258 : vector<8x64xf32>
    %264 = arith.addf %262, %263 : vector<8x64xf32>
    %265 = math.tanh %264 : vector<8x64xf32>
    %266 = arith.mulf %261, %265 : vector<8x64xf32>
    %c0_158 = arith.constant 0 : index
    %c0_159 = arith.constant 0 : index
    %267 = vector.load %arg8[%c0_158, %c0_159] : memref<128x5xf32, #tpu.memory_space<vmem>>, vector<64x5xf32>
    %cst_160 = arith.constant dense<0.000000e+00> : vector<8x5xf32>
    %268 = tpu.matmul %266, %267, %cst_160 {dimension_numbers = #tpu.dot_dimension_numbers<[1], [0], [0], [1], [0, 0, 1, 1], [], []>} : vector<8x64xf32>, vector<64x5xf32>, vector<8x5xf32> -> vector<8x5xf32>
    %c64_161 = arith.constant 64 : index
    %c0_162 = arith.constant 0 : index
    %269 = vector.load %arg8[%c64_161, %c0_162] : memref<128x5xf32, #tpu.memory_space<vmem>>, vector<64x5xf32>
    %cst_163 = arith.constant dense<0.000000e+00> : vector<8x5xf32>
    %270 = tpu.matmul %95, %269, %cst_163 {dimension_numbers = #tpu.dot_dimension_numbers<[1], [0], [0], [1], [0, 0, 1, 1], [], []>} : vector<8x64xf32>, vector<64x5xf32>, vector<8x5xf32> -> vector<8x5xf32>
    %271 = arith.addf %268, %270 : vector<8x5xf32>
    %c0_164 = arith.constant 0 : index
    %c0_165 = arith.constant 0 : index
    %272 = vector.load %arg9[%c0_164, %c0_165] : memref<1x5xf32, #tpu.memory_space<vmem>>, vector<1x5xf32>
    %273 = vector.broadcast %272 : vector<1x5xf32> to vector<8x5xf32>
    %274 = arith.addf %271, %273 : vector<8x5xf32>
    %cst_166 = arith.constant dense<0xFF800000> : vector<8xf32>
    %275 = vector.multi_reduction <maximumf>, %274, %cst_166 [1] : vector<8x5xf32> to vector<8xf32>
    %276 = vector.shape_cast %275 : vector<8xf32> to vector<8x1xf32>
    %277 = vector.broadcast %276 : vector<8x1xf32> to vector<8x5xf32>
    %278 = arith.subf %274, %277 : vector<8x5xf32>
    %279 = math.exp %278 : vector<8x5xf32>
    %cst_167 = arith.constant dense<0.000000e+00> : vector<8xf32>
    %280 = vector.multi_reduction <add>, %279, %cst_167 [1] : vector<8x5xf32> to vector<8xf32>
    %281 = vector.shape_cast %280 : vector<8xf32> to vector<8x1xf32>
    %282 = math.log %281 : vector<8x1xf32>
    %283 = arith.addf %276, %282 : vector<8x1xf32>
    %284 = vector.broadcast %283 : vector<8x1xf32> to vector<8x5xf32>
    %285 = arith.subf %274, %284 : vector<8x5xf32>
    %286 = vector.extract_strided_slice %285 {offsets = [0, 0], sizes = [2, 5], strides = [1, 1]} : vector<8x5xf32> to vector<2x5xf32>
    %c0_168 = arith.constant 0 : index
    %c0_169 = arith.constant 0 : index
    %287 = vector.load %arg10[%c0_168, %c0_169] : memref<2x5xf32, #tpu.memory_space<vmem>>, vector<2x5xf32>
    tpu.vector_store %arg10[%c0_168, %c0_169], %286 {strides = array<i32>} : memref<2x5xf32, #tpu.memory_space<vmem>>, vector<2x5xf32>,
    return
  }
}

</mosaic_0001>

<llo_original>
// kernel: bilstm_forward_fused.1
$region0: #{bilstm_forward_fused.1}
  #allocation0 [shape = 'u32[]', space=smem, size = 0x4, offset = 0x4, fixed_abs, tag = 'smem constant byte address 0x4 - core index']
  #allocation1 [shape = 'u32[144,128]{1,0:T(1,128)}', space=vmem, size = 0x12000, scoped, tag = 'internal scratch']
  #allocation2 [shape = 'f32[64,16]{1,0:T(8,128)}', space=vmem, size = 0x8000, scoped, tag = 'scratch operand']
  #allocation3 [shape = 'f32[64,16]{1,0:T(8,128)}', space=vmem, size = 0x8000, scoped, tag = 'scratch operand']
  #allocation4 [shape = 'f32[64,256]{1,0:T(8,128)}', space=vmem, size = 0x10000, scoped, tag = 'scratch operand']
  %s0 = inlined_call_operand.vmem [shape: f32[8,2,16], index: 0, kind: input, shape index: {}]
  %s1 = inlined_call_operand.vmem [shape: f32[8,2,16], index: 1, kind: input, shape index: {}]
  %s2 = inlined_call_operand.vmem [shape: f32[16,512], index: 2, kind: input, shape index: {}]
  %s3 = inlined_call_operand.vmem [shape: f32[16,512], index: 3, kind: input, shape index: {}]
  %s4 = inlined_call_operand.hbm [shape: f32[128,512], index: 4, kind: input, shape index: {}]
  %s5 = inlined_call_operand.hbm [shape: f32[1,512], index: 5, kind: input, shape index: {}]
  %s6 = inlined_call_operand.hbm [shape: f32[8,128], index: 6, kind: input, shape index: {}]
  %s7 = inlined_call_operand.hbm [shape: f32[8,128], index: 7, kind: input, shape index: {}]
  %s8 = inlined_call_operand.vmem [shape: f32[128,5], index: 8, kind: input, shape index: {}]
  %s9 = inlined_call_operand.vmem [shape: f32[1,5], index: 9, kind: input, shape index: {}]
  %s10 = inlined_call_operand.hbm [shape: f32[2,5], index: 10, kind: output, shape index: {}]
  %s11 = sld [smem:[#allocation0]]
  $region66: #{bilstm_forward_fused.1} parent=0
    _
  %s13 = ssub.s32 1, %s11
  %s14 = scalar_select 0, %s13, %s11
  $region1: #{bilstm_forward_fused.1} parent=0
    #allocation5 [shape = 'u8[262144]{0}', space=vmem, size = 0x40000, scoped, tag = 'input window, operand 4, single buffered']
    #allocation6 [shape = 's32[1]{0}', space=sflag, size = 0x4, scoped, tag = 'scoped memory for bilstm_forward_fused.1']
    #allocation7 [shape = 's32[1]{0}', space=sflag, size = 0x4, scoped, tag = 'scoped memory for bilstm_forward_fused.1']
    #allocation8 [shape = 'u8[2048]{0}', space=vmem, size = 0x800, scoped, tag = 'input window, operand 5, single buffered']
    #allocation9 [shape = 's32[1]{0}', space=sflag, size = 0x4, scoped, tag = 'scoped memory for bilstm_forward_fused.1']
    #allocation10 [shape = 'u8[4096]{0}', space=vmem, size = 0x1000, scoped, tag = 'input window, operand 6, single buffered']
    #allocation11 [shape = 'u8[4096]{0}', space=vmem, size = 0x1000, scoped, tag = 'input window, operand 7, single buffered']
    #allocation12 [shape = 's32[1]{0}', space=sflag, size = 0x4, scoped, tag = 'scoped memory for bilstm_forward_fused.1']
    #allocation13 [shape = 'u8[1024]{0}', space=vmem, size = 0x400, scoped, tag = 'output window, operand 0, single buffered']
    %15 = vsyncpa [#allocation6], 0
    %16 = vsyncpa [#allocation9], 0
    %17 = vsyncpa [#allocation12], 0
    %18 = vsyncpa [#allocation7], 0
    // Predicated region
    $region2: #{bilstm_forward_fused.1} parent=1 // pred_check
      _
    $region3: #{bilstm_forward_fused.1} parent=1 // pred_check_branch
      %20 = sbr.rel (0) target = $region5
    $region4: #{bilstm_forward_fused.1} parent=1 // pred_region
      _
    $region5: #{bilstm_forward_fused.1} parent=1 // pred_fallthru
      _
    // Predicated region
    $region6: #{bilstm_forward_fused.1} parent=1 // pred_check
      _
    $region7: #{bilstm_forward_fused.1} parent=1 // pred_check_branch
      %22 = sbr.rel (0) target = $region9
    $region8: #{bilstm_forward_fused.1} parent=1 // pred_region
      _
    $region9: #{bilstm_forward_fused.1} parent=1 // pred_fallthru
      _
    // Predicated region
    $region10: #{bilstm_forward_fused.1} parent=1 // pred_check
      _
    $region11: #{bilstm_forward_fused.1} parent=1 // pred_check_branch
      %24 = sbr.rel (0) target = $region13
    $region12: #{bilstm_forward_fused.1} parent=1 // pred_region
      _
    $region13: #{bilstm_forward_fused.1} parent=1 // pred_fallthru
      _
    // Predicated region
    $region14: #{bilstm_forward_fused.1} parent=1 // pred_check
      _
    $region15: #{bilstm_forward_fused.1} parent=1 // pred_check_branch
      %26 = sbr.rel (0) target = $region17
    $region16: #{bilstm_forward_fused.1} parent=1 // pred_region
      _
    $region17: #{bilstm_forward_fused.1} parent=1 // pred_fallthru
      _
    // Predicated region
    $region18: #{bilstm_forward_fused.1} parent=1 // pred_check
      _
    $region19: #{bilstm_forward_fused.1} parent=1 // pred_check_branch
      %28 = sbr.rel (0) target = $region21
    $region20: #{bilstm_forward_fused.1} parent=1 // pred_region
      %s30 = ssub.s32 8192, 8192
      %31 = vsyncadd [#allocation6], %s30
      %s32 = sshll.u32 [#allocation5], 4
      %s33 = int_to_ptr.vmem [resolvable:$true] %s32
      %38 = dma.hbm_to_vmem [thread:$0]  %s4, 8192, %s33, [#allocation6], 512, 512, 32
    $region21: #{bilstm_forward_fused.1} parent=1 // pred_fallthru
      _
    // Predicated region
    $region22: #{bilstm_forward_fused.1} parent=1 // pred_check
      _
    $region23: #{bilstm_forward_fused.1} parent=1 // pred_check_branch
      %40 = sbr.rel (0) target = $region25
    $region24: #{bilstm_forward_fused.1} parent=1 // pred_region
      %s42 = ssub.s32 64, 64
      %43 = vsyncadd [#allocation9], %s42
      %s45 = sshll.u32 [#allocation8], 4
      %s46 = int_to_ptr.vmem [resolvable:$true] %s45
      %48 = dma.hbm_to_vmem [thread:$0]  %s5, 64, %s46, [#allocation9]
    $region25: #{bilstm_forward_fused.1} parent=1 // pred_fallthru
      _
    // Predicated region
    $region26: #{bilstm_forward_fused.1} parent=1 // pred_check
      _
    $region27: #{bilstm_forward_fused.1} parent=1 // pred_check_branch
      %50 = sbr.rel (0) target = $region29
    $region28: #{bilstm_forward_fused.1} parent=1 // pred_region
      %s52 = ssub.s32 128, 128
      %53 = vsyncadd [#allocation9], %s52
      %s55 = sshll.u32 [#allocation10], 4
      %s56 = int_to_ptr.vmem [resolvable:$true] %s55
      %58 = dma.hbm_to_vmem [thread:$0]  %s6, 128, %s56, [#allocation9]
    $region29: #{bilstm_forward_fused.1} parent=1 // pred_fallthru
      _
    // Predicated region
    $region30: #{bilstm_forward_fused.1} parent=1 // pred_check
      _
    $region31: #{bilstm_forward_fused.1} parent=1 // pred_check_branch
      %60 = sbr.rel (0) target = $region33
    $region32: #{bilstm_forward_fused.1} parent=1 // pred_region
      %s62 = ssub.s32 128, 128
      %63 = vsyncadd [#allocation12], %s62
      %s65 = sshll.u32 [#allocation11], 4
      %s66 = int_to_ptr.vmem [resolvable:$true] %s65
      %68 = dma.hbm_to_vmem [thread:$0]  %s7, 128, %s66, [#allocation12]
    $region33: #{bilstm_forward_fused.1} parent=1 // pred_fallthru
      _
    // Predicated region
    $region34: #{bilstm_forward_fused.1} parent=1 // pred_check
      _
    $region35: #{bilstm_forward_fused.1} parent=1 // pred_check_branch
      %70 = sbr.rel (0) target = $region37
    $region36: #{bilstm_forward_fused.1} parent=1 // pred_region
      _
    $region37: #{bilstm_forward_fused.1} parent=1 // pred_fallthru
      _
    // Predicated region
    $region38: #{bilstm_forward_fused.1} parent=1 // pred_check
      _
    $region39: #{bilstm_forward_fused.1} parent=1 // pred_check_branch
      %72 = sbr.rel (0) target = $region41
    $region40: #{bilstm_forward_fused.1} parent=1 // pred_region
      _
    $region41: #{bilstm_forward_fused.1} parent=1 // pred_fallthru
      _
    // Predicated region
    $region42: #{bilstm_forward_fused.1} parent=1 // pred_check
      _
    $region43: #{bilstm_forward_fused.1} parent=1 // pred_check_branch
      %74 = sbr.rel (0) target = $region45
    $region44: #{bilstm_forward_fused.1} parent=1 // pred_region
      %75 = dma.done [#allocation6], 8192
    $region45: #{bilstm_forward_fused.1} parent=1 // pred_fallthru
      _
    // Predicated region
    $region46: #{bilstm_forward_fused.1} parent=1 // pred_check
      _
    $region47: #{bilstm_forward_fused.1} parent=1 // pred_check_branch
      %77 = sbr.rel (0) target = $region49
    $region48: #{bilstm_forward_fused.1} parent=1 // pred_region
      %78 = dma.done [#allocation9], 64
    $region49: #{bilstm_forward_fused.1} parent=1 // pred_fallthru
      _
    // Predicated region
    $region50: #{bilstm_forward_fused.1} parent=1 // pred_check
      _
    $region51: #{bilstm_forward_fused.1} parent=1 // pred_check_branch
      %80 = sbr.rel (0) target = $region53
    $region52: #{bilstm_forward_fused.1} parent=1 // pred_region
      %81 = dma.done [#allocation9], 128
    $region53: #{bilstm_forward_fused.1} parent=1 // pred_fallthru
      _
    // Predicated region
    $region54: #{bilstm_forward_fused.1} parent=1 // pred_check
      _
    $region55: #{bilstm_forward_fused.1} parent=1 // pred_check_branch
      %83 = sbr.rel (0) target = $region57
    $region56: #{bilstm_forward_fused.1} parent=1 // pred_region
      %84 = dma.done [#allocation12], 128
    $region57: #{bilstm_forward_fused.1} parent=1 // pred_fallthru
      _
    %vm85 = vcmask 130048
    %86 = vst.msk [vmem:[#allocation2] sm:$0xff] %vm85, 0.0
    %87 = vst.msk [vmem:[#allocation2 + $0x8] sm:$0xff] %vm85, 0.0
    %88 = vst.msk [vmem:[#allocation2 + $0x10] sm:$0xff] %vm85, 0.0
    %89 = vst.msk [vmem:[#allocation2 + $0x18] sm:$0xff] %vm85, 0.0
    %90 = vst.msk [vmem:[#allocation2 + $0x20] sm:$0xff] %vm85, 0.0
    %91 = vst.msk [vmem:[#allocation2 + $0x28] sm:$0xff] %vm85, 0.0
    %92 = vst.msk [vmem:[#allocation2 + $0x30] sm:$0xff] %vm85, 0.0
    %93 = vst.msk [vmem:[#allocation2 + $0x38] sm:$0xff] %vm85, 0.0
    %94 = vst.msk [vmem:[#allocation3] sm:$0xff] %vm85, 0.0
    %95 = vst.msk [vmem:[#allocation3 + $0x8] sm:$0xff] %vm85, 0.0
    %96 = vst.msk [vmem:[#allocation3 + $0x10] sm:$0xff] %vm85, 0.0
    %97 = vst.msk [vmem:[#allocation3 + $0x18] sm:$0xff] %vm85, 0.0
    %98 = vst.msk [vmem:[#allocation3 + $0x20] sm:$0xff] %vm85, 0.0
    %99 = vst.msk [vmem:[#allocation3 + $0x28] sm:$0xff] %vm85, 0.0
    %100 = vst.msk [vmem:[#allocation3 + $0x30] sm:$0xff] %vm85, 0.0
    %101 = vst.msk [vmem:[#allocation3 + $0x38] sm:$0xff] %vm85, 0.0
    %v102 = vld [vmem:[%s0] sm:$0x3]
    %vm103 = vcmask 123904
    %104 = vst.msk [vmem:[#allocation2] sm:$0x3] %vm103, %v102
    %v105 = vld [vmem:[%s1] sm:$0x3]
    %106 = vst.msk [vmem:[#allocation3] sm:$0x3] %vm103, %v105
    %s107 = scalar_lea.vmem %s0, 2
    %v108 = vld [vmem:[%s107] sm:$0x3]
    %109 = vst.msk [vmem:[#allocation2 + $0x8] sm:$0x3] %vm103, %v108
    %s110 = scalar_lea.vmem %s1, 2
    %v111 = vld [vmem:[%s110] sm:$0x3]
    %112 = vst.msk [vmem:[#allocation3 + $0x8] sm:$0x3] %vm103, %v111
    %s113 = scalar_lea.vmem %s0, 4
    %v114 = vld [vmem:[%s113] sm:$0x3]
    %115 = vst.msk [vmem:[#allocation2 + $0x10] sm:$0x3] %vm103, %v114
    %s116 = scalar_lea.vmem %s1, 4
    %v117 = vld [vmem:[%s116] sm:$0x3]
    %118 = vst.msk [vmem:[#allocation3 + $0x10] sm:$0x3] %vm103, %v117
    %s119 = scalar_lea.vmem %s0, 6
    %v120 = vld [vmem:[%s119] sm:$0x3]
    %121 = vst.msk [vmem:[#allocation2 + $0x18] sm:$0x3] %vm103, %v120
    %s122 = scalar_lea.vmem %s1, 6
    %v123 = vld [vmem:[%s122] sm:$0x3]
    %124 = vst.msk [vmem:[#allocation3 + $0x18] sm:$0x3] %vm103, %v123
    %s125 = scalar_lea.vmem %s0, 8
    %v126 = vld [vmem:[%s125] sm:$0x3]
    %127 = vst.msk [vmem:[#allocation2 + $0x20] sm:$0x3] %vm103, %v126
    %s128 = scalar_lea.vmem %s1, 8
    %v129 = vld [vmem:[%s128] sm:$0x3]
    %130 = vst.msk [vmem:[#allocation3 + $0x20] sm:$0x3] %vm103, %v129
    %s131 = scalar_lea.vmem %s0, 10
    %v132 = vld [vmem:[%s131] sm:$0x3]
    %133 = vst.msk [vmem:[#allocation2 + $0x28] sm:$0x3] %vm103, %v132
    %s134 = scalar_lea.vmem %s1, 10
    %v135 = vld [vmem:[%s134] sm:$0x3]
    %136 = vst.msk [vmem:[#allocation3 + $0x28] sm:$0x3] %vm103, %v135
    %s137 = scalar_lea.vmem %s0, 12
    %v138 = vld [vmem:[%s137] sm:$0x3]
    %139 = vst.msk [vmem:[#allocation2 + $0x30] sm:$0x3] %vm103, %v138
    %s140 = scalar_lea.vmem %s1, 12
    %v141 = vld [vmem:[%s140] sm:$0x3]
    %142 = vst.msk [vmem:[#allocation3 + $0x30] sm:$0x3] %vm103, %v141
    %s143 = scalar_lea.vmem %s0, 14
    %v144 = vld [vmem:[%s143] sm:$0x3]
    %145 = vst.msk [vmem:[#allocation2 + $0x38] sm:$0x3] %vm103, %v144
    %s146 = scalar_lea.vmem %s1, 14
    %v147 = vld [vmem:[%s146] sm:$0x3]
    %148 = vst.msk [vmem:[#allocation3 + $0x38] sm:$0x3] %vm103, %v147
    %v149 = vld [vmem:[#allocation2] sm:$0xff]
    %v150 = vld [vmem:[#allocation2 + $0x8] sm:$0xff]
    %v151 = vld [vmem:[#allocation2 + $0x10] sm:$0xff]
    %v152 = vld [vmem:[#allocation2 + $0x18] sm:$0xff]
    %v153 = vld [vmem:[#allocation2 + $0x20] sm:$0xff]
    %v154 = vld [vmem:[#allocation2 + $0x28] sm:$0xff]
    %v155 = vld [vmem:[#allocation2 + $0x30] sm:$0xff]
    %v156 = vld [vmem:[#allocation2 + $0x38] sm:$0xff]
    %v157 = vld [vmem:[%s2] sm:$0xff]
    %v158 = vld [vmem:[%s2 + $0x8] sm:$0xff]
    %v159 = vld [vmem:[%s2 + $0x20] sm:$0xff]
    %v160 = vld [vmem:[%s2 + $0x28] sm:$0xff]
    %v161 = vld [vmem:[#allocation3] sm:$0xff]
    %v162 = vld [vmem:[#allocation3 + $0x8] sm:$0xff]
    %v163 = vld [vmem:[#allocation3 + $0x10] sm:$0xff]
    %v164 = vld [vmem:[#allocation3 + $0x18] sm:$0xff]
    %v165 = vld [vmem:[#allocation3 + $0x20] sm:$0xff]
    %v166 = vld [vmem:[#allocation3 + $0x28] sm:$0xff]
    %v167 = vld [vmem:[#allocation3 + $0x30] sm:$0xff]
    %v168 = vld [vmem:[#allocation3 + $0x38] sm:$0xff]
    %v169 = vld [vmem:[%s3] sm:$0xff]
    %v170 = vld [vmem:[%s3 + $0x8] sm:$0xff]
    %v171 = vld [vmem:[%s3 + $0x20] sm:$0xff]
    %v172 = vld [vmem:[%s3 + $0x28] sm:$0xff]
    %v174 = vsel %vm85, %v161, 0
    %v177 = vsel %vm85, %v162, 0
    %v180 = vsel %vm85, %v163, 0
    %v183 = vsel %vm85, %v164, 0
    %v186 = vsel %vm85, %v165, 0
    %v189 = vsel %vm85, %v166, 0
    %v192 = vsel %vm85, %v167, 0
    %v195 = vsel %vm85, %v168, 0
    %197 = vmatprep.subr.mxu0 %v170
    %198 = vmatpush1.msra.mxu0 %v169
    %199 = vmatprep.subr.mxu0 %v172
    %200 = vmatpush1.msra.mxu0 %v171
    %201 = vmatprep.subr.mxu0 0.0
    %202 = vmatpush1.msra.mxu0 0.0
    %203 = vmatprep.subr.mxu0 0.0
    %204 = vmatpush1.msra.mxu0 0.0
    %205 = vmatprep.subr.mxu0 0.0
    %206 = vmatpush1.msra.mxu0 0.0
    %207 = vmatprep.subr.mxu0 0.0
    %208 = vmatpush1.msra.mxu0 0.0
    %209 = vmatprep.subr.mxu0 0.0
    %210 = vmatpush1.msra.mxu0 0.0
    %211 = vmatprep.subr.mxu0 0.0
    %212 = vmatpush1.msra.mxu0 0.0
    %213 = vmatprep.subr.mxu0 0.0
    %214 = vmatpush1.msra.mxu0 0.0
    %215 = vmatprep.subr.mxu0 0.0
    %216 = vmatpush1.msra.mxu0 0.0
    %217 = vmatprep.subr.mxu0 0.0
    %218 = vmatpush1.msra.mxu0 0.0
    %219 = vmatprep.subr.mxu0 0.0
    %220 = vmatpush1.msra.mxu0 0.0
    %221 = vmatprep.subr.mxu0 0.0
    %222 = vmatpush1.msra.mxu0 0.0
    %223 = vmatprep.subr.mxu0 0.0
    %224 = vmatpush1.msra.mxu0 0.0
    %225 = vmatprep.subr.mxu0 0.0
    %226 = vmatpush1.msra.mxu0 0.0
    %227 = vmatprep.subr.mxu0 0.0
    %228 = vmatpush1.msra.mxu0 0.0
    %229 = vmatprep.subr.mxu0 0.0
    %230 = vmatpush1.msra.mxu0 0.0
    %231 = vmatprep.subr.mxu0 0.0
    %232 = vmatpush1.msra.mxu0 0.0
    %233 = vmatprep.subr.mxu0 0.0
    %234 = vmatpush1.msra.mxu0 0.0
    %235 = vmatprep.subr.mxu0 0.0
    %236 = vmatpush1.msra.mxu0 0.0
    %237 = vmatprep.subr.mxu0 0.0
    %238 = vmatpush1.msra.mxu0 0.0
    %239 = vmatprep.subr.mxu0 0.0
    %240 = vmatpush1.msra.mxu0 0.0
    %241 = vmatprep.subr.mxu0 0.0
    %242 = vmatpush1.msra.mxu0 0.0
    %243 = vmatprep.subr.mxu0 0.0
    %244 = vmatpush1.msra.mxu0 0.0
    %245 = vmatprep.subr.mxu0 0.0
    %246 = vmatpush1.msra.mxu0 0.0
    %247 = vmatprep.subr.mxu0 0.0
    %248 = vmatpush1.msra.mxu0 0.0
    %249 = vmatprep.subr.mxu0 0.0
    %250 = vmatpush1.msra.mxu0 0.0
    %251 = vmatprep.subr.mxu0 0.0
    %252 = vmatpush1.msra.mxu0 0.0
    %253 = vmatprep.subr.mxu0 0.0
    %254 = vmatpush1.msra.mxu0 0.0
    %255 = vmatprep.subr.mxu0 0.0
    %256 = vmatpush1.msra.mxu0 0.0
    %257 = vmatprep.subr.mxu0 0.0
    %258 = vmatpush1.msra.mxu0 0.0
    %259 = vmatprep.subr.mxu0 0.0
    %260 = vmatpush1.msra.mxu0 0.0
    %261 = vmatprep.mubr.f32.mxu0 0.0
    %262 = vmatmul.mubr.f32.gmra.mrb[0].mxu0 %v174
    %v263 = vpop.f32.mrb[0].mxu0
    %v264 = vadd.f32 0.0, %v263
    %v265 = vpop.f32.mrb[0].mxu0
    %v266 = vadd.f32 0.0, %v265
    %267 = vmatprep.mubr.f32.mxu0 0.0
    %268 = vmatmul.mubr.f32.gmra.mrb[0].mxu0 %v177
    %v269 = vpop.f32.mrb[0].mxu0
    %v270 = vadd.f32 0.0, %v269
    %v271 = vpop.f32.mrb[0].mxu0
    %v272 = vadd.f32 0.0, %v271
    %273 = vmatprep.mubr.f32.mxu0 0.0
    %274 = vmatmul.mubr.f32.gmra.mrb[0].mxu0 %v180
    %v275 = vpop.f32.mrb[0].mxu0
    %v276 = vadd.f32 0.0, %v275
    %v277 = vpop.f32.mrb[0].mxu0
    %v278 = vadd.f32 0.0, %v277
    %279 = vmatprep.mubr.f32.mxu0 0.0
    %280 = vmatmul.mubr.f32.gmra.mrb[0].mxu0 %v183
    %v281 = vpop.f32.mrb[0].mxu0
    %v282 = vadd.f32 0.0, %v281
    %v283 = vpop.f32.mrb[0].mxu0
    %v284 = vadd.f32 0.0, %v283
    %285 = vmatprep.mubr.f32.mxu0 0.0
    %286 = vmatmul.mubr.f32.gmra.mrb[0].mxu0 %v186
    %v287 = vpop.f32.mrb[0].mxu0
    %v288 = vadd.f32 0.0, %v287
    %v289 = vpop.f32.mrb[0].mxu0
    %v290 = vadd.f32 0.0, %v289
    %291 = vmatprep.mubr.f32.mxu0 0.0
    %292 = vmatmul.mubr.f32.gmra.mrb[0].mxu0 %v189
    %v293 = vpop.f32.mrb[0].mxu0
    %v294 = vadd.f32 0.0, %v293
    %v295 = vpop.f32.mrb[0].mxu0
    %v296 = vadd.f32 0.0, %v295
    %297 = vmatprep.mubr.f32.mxu0 0.0
    %298 = vmatmul.mubr.f32.gmra.mrb[0].mxu0 %v192
    %v299 = vpop.f32.mrb[0].mxu0
    %v300 = vadd.f32 0.0, %v299
    %v301 = vpop.f32.mrb[0].mxu0
    %v302 = vadd.f32 0.0, %v301
    %303 = vmatprep.mubr.f32.mxu0 0.0
    %304 = vmatmul.mubr.f32.gmra.mrb[0].mxu0 %v195
    %v305 = vpop.f32.mrb[0].mxu0
    %v306 = vadd.f32 0.0, %v305
    %v307 = vpop.f32.mrb[0].mxu0
    %v308 = vadd.f32 0.0, %v307
    %309 = vdwg.mxu0
    %v311 = vsel %vm85, %v149, 0
    %v314 = vsel %vm85, %v150, 0
    %v317 = vsel %vm85, %v151, 0
    %v320 = vsel %vm85, %v152, 0
    %v323 = vsel %vm85, %v153, 0
    %v326 = vsel %vm85, %v154, 0
    %v329 = vsel %vm85, %v155, 0
    %v332 = vsel %vm85, %v156, 0
    %334 = vmatprep.subr.mxu0 %v158
    %335 = vmatpush1.msra.mxu0 %v157
    %336 = vmatprep.subr.mxu0 %v160
    %337 = vmatpush1.msra.mxu0 %v159
    %338 = vmatprep.subr.mxu0 0.0
    %339 = vmatpush1.msra.mxu0 0.0
    %340 = vmatprep.subr.mxu0 0.0
    %341 = vmatpush1.msra.mxu0 0.0
    %342 = vmatprep.subr.mxu0 0.0
    %343 = vmatpush1.msra.mxu0 0.0
    %344 = vmatprep.subr.mxu0 0.0
    %345 = vmatpush1.msra.mxu0 0.0
    %346 = vmatprep.subr.mxu0 0.0
    %347 = vmatpush1.msra.mxu0 0.0
    %348 = vmatprep.subr.mxu0 0.0
    %349 = vmatpush1.msra.mxu0 0.0
    %350 = vmatprep.subr.mxu0 0.0
    %351 = vmatpush1.msra.mxu0 0.0
    %352 = vmatprep.subr.mxu0 0.0
    %353 = vmatpush1.msra.mxu0 0.0
    %354 = vmatprep.subr.mxu0 0.0
    %355 = vmatpush1.msra.mxu0 0.0
    %356 = vmatprep.subr.mxu0 0.0
    %357 = vmatpush1.msra.mxu0 0.0
    %358 = vmatprep.subr.mxu0 0.0
    %359 = vmatpush1.msra.mxu0 0.0
    %360 = vmatprep.subr.mxu0 0.0
    %361 = vmatpush1.msra.mxu0 0.0
    %362 = vmatprep.subr.mxu0 0.0
    %363 = vmatpush1.msra.mxu0 0.0
    %364 = vmatprep.subr.mxu0 0.0
    %365 = vmatpush1.msra.mxu0 0.0
    %366 = vmatprep.subr.mxu0 0.0
    %367 = vmatpush1.msra.mxu0 0.0
    %368 = vmatprep.subr.mxu0 0.0
    %369 = vmatpush1.msra.mxu0 0.0
    %370 = vmatprep.subr.mxu0 0.0
    %371 = vmatpush1.msra.mxu0 0.0
    %372 = vmatprep.subr.mxu0 0.0
    %373 = vmatpush1.msra.mxu0 0.0
    %374 = vmatprep.subr.mxu0 0.0
    %375 = vmatpush1.msra.mxu0 0.0
    %376 = vmatprep.subr.mxu0 0.0
    %377 = vmatpush1.msra.mxu0 0.0
    %378 = vmatprep.subr.mxu0 0.0
    %379 = vmatpush1.msra.mxu0 0.0
    %380 = vmatprep.subr.mxu0 0.0
    %381 = vmatpush1.msra.mxu0 0.0
    %382 = vmatprep.subr.mxu0 0.0
    %383 = vmatpush1.msra.mxu0 0.0
    %384 = vmatprep.subr.mxu0 0.0
    %385 = vmatpush1.msra.mxu0 0.0
    %386 = vmatprep.subr.mxu0 0.0
    %387 = vmatpush1.msra.mxu0 0.0
    %388 = vmatprep.subr.mxu0 0.0
    %389 = vmatpush1.msra.mxu0 0.0
    %390 = vmatprep.subr.mxu0 0.0
    %391 = vmatpush1.msra.mxu0 0.0
    %392 = vmatprep.subr.mxu0 0.0
    %393 = vmatpush1.msra.mxu0 0.0
    %394 = vmatprep.subr.mxu0 0.0
    %395 = vmatpush1.msra.mxu0 0.0
    %396 = vmatprep.subr.mxu0 0.0
    %397 = vmatpush1.msra.mxu0 0.0
    %398 = vmatprep.mubr.f32.mxu0 0.0
    %399 = vmatmul.mubr.f32.gmra.mrb[0].mxu0 %v311
    %v400 = vpop.f32.mrb[0].mxu0
    %v401 = vadd.f32 %v264, %v400
    %v402 = vpop.f32.mrb[0].mxu0
    %v403 = vadd.f32 %v266, %v402
    %404 = vmatprep.mubr.f32.mxu0 0.0
    %405 = vmatmul.mubr.f32.gmra.mrb[0].mxu0 %v314
    %v406 = vpop.f32.mrb[0].mxu0
    %v407 = vadd.f32 %v270, %v406
    %v408 = vpop.f32.mrb[0].mxu0
    %v409 = vadd.f32 %v272, %v408
    %410 = vmatprep.mubr.f32.mxu0 0.0
    %411 = vmatmul.mubr.f32.gmra.mrb[0].mxu0 %v317
    %v412 = vpop.f32.mrb[0].mxu0
    %v413 = vadd.f32 %v276, %v412
    %v414 = vpop.f32.mrb[0].mxu0
    %v415 = vadd.f32 %v278, %v414
    %416 = vmatprep.mubr.f32.mxu0 0.0
    %417 = vmatmul.mubr.f32.gmra.mrb[0].mxu0 %v320
    %v418 = vpop.f32.mrb[0].mxu0
    %v419 = vadd.f32 %v282, %v418
    %v420 = vpop.f32.mrb[0].mxu0
    %v421 = vadd.f32 %v284, %v420
    %422 = vmatprep.mubr.f32.mxu0 0.0
    %423 = vmatmul.mubr.f32.gmra.mrb[0].mxu0 %v323
    %v424 = vpop.f32.mrb[0].mxu0
    %v425 = vadd.f32 %v288, %v424
    %v426 = vpop.f32.mrb[0].mxu0
    %v427 = vadd.f32 %v290, %v426
    %428 = vmatprep.mubr.f32.mxu0 0.0
    %429 = vmatmul.mubr.f32.gmra.mrb[0].mxu0 %v326
    %v430 = vpop.f32.mrb[0].mxu0
    %v431 = vadd.f32 %v294, %v430
    %v432 = vpop.f32.mrb[0].mxu0
    %v433 = vadd.f32 %v296, %v432
    %434 = vmatprep.mubr.f32.mxu0 0.0
    %435 = vmatmul.mubr.f32.gmra.mrb[0].mxu0 %v329
    %v436 = vpop.f32.mrb[0].mxu0
    %v437 = vadd.f32 %v300, %v436
    %v438 = vpop.f32.mrb[0].mxu0
    %v439 = vadd.f32 %v302, %v438
    %440 = vmatprep.mubr.f32.mxu0 0.0
    %441 = vmatmul.mubr.f32.gmra.mrb[0].mxu0 %v332
    %v442 = vpop.f32.mrb[0].mxu0
    %v443 = vadd.f32 %v306, %v442
    %v444 = vpop.f32.mrb[0].mxu0
    %v445 = vadd.f32 %v308, %v444
    %446 = vdwg.mxu0
    %v447 = vld [vmem:[#allocation8] sm:$0x3]
    %v449 = vlaneseq
    %v450 = vshrl.u32 %v449, 7
    %v451 = vsub.s32 0, %v450
    %v452 = vrot.slane %v447, %v451
    %v453 = vlaneseq
    %v454 = vshrl.u32 %v453, 7
    %v455 = vsub.s32 1, %v454
    %v456 = vrot.slane %v447, %v455
    %v459 = vadd.f32 %v401, %v452
    %v460 = vadd.f32 %v403, %v456
    %v461 = vadd.f32 %v407, %v452
    %v462 = vadd.f32 %v409, %v456
    %v463 = vadd.f32 %v413, %v452
    %v464 = vadd.f32 %v415, %v456
    %v465 = vadd.f32 %v419, %v452
    %v466 = vadd.f32 %v421, %v456
    %v467 = vadd.f32 %v425, %v452
    %v468 = vadd.f32 %v427, %v456
    %v469 = vadd.f32 %v431, %v452
    %v470 = vadd.f32 %v433, %v456
    %v471 = vadd.f32 %v437, %v452
    %v472 = vadd.f32 %v439, %v456
    %v473 = vadd.f32 %v443, %v452
    %v474 = vadd.f32 %v445, %v456
    %475 = vst [vmem:[#allocation4] sm:$0xff] %v459
    %476 = vst [vmem:[#allocation4 + $0x8] sm:$0xff] %v460
    %477 = vst [vmem:[#allocation4 + $0x10] sm:$0xff] %v461
    %478 = vst [vmem:[#allocation4 + $0x18] sm:$0xff] %v462
    %479 = vst [vmem:[#allocation4 + $0x20] sm:$0xff] %v463
    %480 = vst [vmem:[#allocation4 + $0x28] sm:$0xff] %v464
    %481 = vst [vmem:[#allocation4 + $0x30] sm:$0xff] %v465
    %482 = vst [vmem:[#allocation4 + $0x38] sm:$0xff] %v466
    %483 = vst [vmem:[#allocation4 + $0x40] sm:$0xff] %v467
    %484 = vst [vmem:[#allocation4 + $0x48] sm:$0xff] %v468
    %485 = vst [vmem:[#allocation4 + $0x50] sm:$0xff] %v469
    %486 = vst [vmem:[#allocation4 + $0x58] sm:$0xff] %v470
    %487 = vst [vmem:[#allocation4 + $0x60] sm:$0xff] %v471
    %488 = vst [vmem:[#allocation4 + $0x68] sm:$0xff] %v472
    %489 = vst [vmem:[#allocation4 + $0x70] sm:$0xff] %v473
    %490 = vst [vmem:[#allocation4 + $0x78] sm:$0xff] %v474
    %v491 = vld [vmem:[#allocation2 + $0x38] sm:$0xff]
    %v492 = vld [vmem:[#allocation3 + $0x38] sm:$0xff]
    %v493 = vld [vmem:[%s2 + $0x10] sm:$0xff]
    %v494 = vld [vmem:[%s2 + $0x18] sm:$0xff]
    %v495 = vld [vmem:[%s2 + $0x30] sm:$0xff]
    %v496 = vld [vmem:[%s2 + $0x38] sm:$0xff]
    %v497 = vld [vmem:[%s3 + $0x10] sm:$0xff]
    %v498 = vld [vmem:[%s3 + $0x18] sm:$0xff]
    %v499 = vld [vmem:[%s3 + $0x30] sm:$0xff]
    %v500 = vld [vmem:[%s3 + $0x38] sm:$0xff]
    %v502 = vsel %vm85, %v492, 0
    %504 = vmatprep.subr.mxu0 %v498
    %505 = vmatpush1.msra.mxu0 %v497
    %506 = vmatprep.subr.mxu0 %v500
    %507 = vmatpush1.msra.mxu0 %v499
    %508 = vmatprep.subr.mxu0 0.0
    %509 = vmatpush1.msra.mxu0 0.0
    %510 = vmatprep.subr.mxu0 0.0
    %511 = vmatpush1.msra.mxu0 0.0
    %512 = vmatprep.subr.mxu0 0.0
    %513 = vmatpush1.msra.mxu0 0.0
    %514 = vmatprep.subr.mxu0 0.0
    %515 = vmatpush1.msra.mxu0 0.0
    %516 = vmatprep.subr.mxu0 0.0
    %517 = vmatpush1.msra.mxu0 0.0
    %518 = vmatprep.subr.mxu0 0.0
    %519 = vmatpush1.msra.mxu0 0.0
    %520 = vmatprep.subr.mxu0 0.0
    %521 = vmatpush1.msra.mxu0 0.0
    %522 = vmatprep.subr.mxu0 0.0
    %523 = vmatpush1.msra.mxu0 0.0
    %524 = vmatprep.subr.mxu0 0.0
    %525 = vmatpush1.msra.mxu0 0.0
    %526 = vmatprep.subr.mxu0 0.0
    %527 = vmatpush1.msra.mxu0 0.0
    %528 = vmatprep.subr.mxu0 0.0
    %529 = vmatpush1.msra.mxu0 0.0
    %530 = vmatprep.subr.mxu0 0.0
    %531 = vmatpush1.msra.mxu0 0.0
    %532 = vmatprep.subr.mxu0 0.0
    %533 = vmatpush1.msra.mxu0 0.0
    %534 = vmatprep.subr.mxu0 0.0
    %535 = vmatpush1.msra.mxu0 0.0
    %536 = vmatprep.subr.mxu0 0.0
    %537 = vmatpush1.msra.mxu0 0.0
    %538 = vmatprep.subr.mxu0 0.0
    %539 = vmatpush1.msra.mxu0 0.0
    %540 = vmatprep.subr.mxu0 0.0
    %541 = vmatpush1.msra.mxu0 0.0
    %542 = vmatprep.subr.mxu0 0.0
    %543 = vmatpush1.msra.mxu0 0.0
    %544 = vmatprep.subr.mxu0 0.0
    %545 = vmatpush1.msra.mxu0 0.0
    %546 = vmatprep.subr.mxu0 0.0
    %547 = vmatpush1.msra.mxu0 0.0
    %548 = vmatprep.subr.mxu0 0.0
    %549 = vmatpush1.msra.mxu0 0.0
    %550 = vmatprep.subr.mxu0 0.0
    %551 = vmatpush1.msra.mxu0 0.0
    %552 = vmatprep.subr.mxu0 0.0
    %553 = vmatpush1.msra.mxu0 0.0
    %554 = vmatprep.subr.mxu0 0.0
    %555 = vmatpush1.msra.mxu0 0.0
    %556 = vmatprep.subr.mxu0 0.0
    %557 = vmatpush1.msra.mxu0 0.0
    %558 = vmatprep.subr.mxu0 0.0
    %559 = vmatpush1.msra.mxu0 0.0
    %560 = vmatprep.subr.mxu0 0.0
    %561 = vmatpush1.msra.mxu0 0.0
    %562 = vmatprep.subr.mxu0 0.0
    %563 = vmatpush1.msra.mxu0 0.0
    %564 = vmatprep.subr.mxu0 0.0
    %565 = vmatpush1.msra.mxu0 0.0
    %566 = vmatprep.subr.mxu0 0.0
    %567 = vmatpush1.msra.mxu0 0.0
    %568 = vmatprep.mubr.f32.mxu0 0.0
    %569 = vmatmul.mubr.f32.gmra.mrb[0].mxu0 %v502
    %v570 = vpop.f32.mrb[0].mxu0
    %v571 = vadd.f32 0.0, %v570
    %v572 = vpop.f32.mrb[0].mxu0
    %v573 = vadd.f32 0.0, %v572
    %574 = vdwg.mxu0
    %v576 = vsel %vm85, %v491, 0
    %578 = vmatprep.subr.mxu0 %v494
    %579 = vmatpush1.msra.mxu0 %v493
    %580 = vmatprep.subr.mxu0 %v496
    %581 = vmatpush1.msra.mxu0 %v495
    %582 = vmatprep.subr.mxu0 0.0
    %583 = vmatpush1.msra.mxu0 0.0
    %584 = vmatprep.subr.mxu0 0.0
    %585 = vmatpush1.msra.mxu0 0.0
    %586 = vmatprep.subr.mxu0 0.0
    %587 = vmatpush1.msra.mxu0 0.0
    %588 = vmatprep.subr.mxu0 0.0
    %589 = vmatpush1.msra.mxu0 0.0
    %590 = vmatprep.subr.mxu0 0.0
    %591 = vmatpush1.msra.mxu0 0.0
    %592 = vmatprep.subr.mxu0 0.0
    %593 = vmatpush1.msra.mxu0 0.0
    %594 = vmatprep.subr.mxu0 0.0
    %595 = vmatpush1.msra.mxu0 0.0
    %596 = vmatprep.subr.mxu0 0.0
    %597 = vmatpush1.msra.mxu0 0.0
    %598 = vmatprep.subr.mxu0 0.0
    %599 = vmatpush1.msra.mxu0 0.0
    %600 = vmatprep.subr.mxu0 0.0
    %601 = vmatpush1.msra.mxu0 0.0
    %602 = vmatprep.subr.mxu0 0.0
    %603 = vmatpush1.msra.mxu0 0.0
    %604 = vmatprep.subr.mxu0 0.0
    %605 = vmatpush1.msra.mxu0 0.0
    %606 = vmatprep.subr.mxu0 0.0
    %607 = vmatpush1.msra.mxu0 0.0
    %608 = vmatprep.subr.mxu0 0.0
    %609 = vmatpush1.msra.mxu0 0.0
    %610 = vmatprep.subr.mxu0 0.0
    %611 = vmatpush1.msra.mxu0 0.0
    %612 = vmatprep.subr.mxu0 0.0
    %613 = vmatpush1.msra.mxu0 0.0
    %614 = vmatprep.subr.mxu0 0.0
    %615 = vmatpush1.msra.mxu0 0.0
    %616 = vmatprep.subr.mxu0 0.0
    %617 = vmatpush1.msra.mxu0 0.0
    %618 = vmatprep.subr.mxu0 0.0
    %619 = vmatpush1.msra.mxu0 0.0
    %620 = vmatprep.subr.mxu0 0.0
    %621 = vmatpush1.msra.mxu0 0.0
    %622 = vmatprep.subr.mxu0 0.0
    %623 = vmatpush1.msra.mxu0 0.0
    %624 = vmatprep.subr.mxu0 0.0
    %625 = vmatpush1.msra.mxu0 0.0
    %626 = vmatprep.subr.mxu0 0.0
    %627 = vmatpush1.msra.mxu0 0.0
    %628 = vmatprep.subr.mxu0 0.0
    %629 = vmatpush1.msra.mxu0 0.0
    %630 = vmatprep.subr.mxu0 0.0
    %631 = vmatpush1.msra.mxu0 0.0
    %632 = vmatprep.subr.mxu0 0.0
    %633 = vmatpush1.msra.mxu0 0.0
    %634 = vmatprep.subr.mxu0 0.0
    %635 = vmatpush1.msra.mxu0 0.0
    %636 = vmatprep.subr.mxu0 0.0
    %637 = vmatpush1.msra.mxu0 0.0
    %638 = vmatprep.subr.mxu0 0.0
    %639 = vmatpush1.msra.mxu0 0.0
    %640 = vmatprep.subr.mxu0 0.0
    %641 = vmatpush1.msra.mxu0 0.0
    %642 = vmatprep.mubr.f32.mxu0 0.0
    %643 = vmatmul.mubr.f32.gmra.mrb[0].mxu0 %v576
    %v644 = vpop.f32.mrb[0].mxu0
    %v645 = vadd.f32 %v571, %v644
    %v646 = vpop.f32.mrb[0].mxu0
    %v647 = vadd.f32 %v573, %v646
    %648 = vdwg.mxu0
    %v649 = vld [vmem:[#allocation8 + $0x2] sm:$0x3]
    %v651 = vlaneseq
    %v652 = vshrl.u32 %v651, 7
    %v653 = vsub.s32 0, %v652
    %v654 = vrot.slane %v649, %v653
    %v655 = vlaneseq
    %v656 = vshrl.u32 %v655, 7
    %v657 = vsub.s32 1, %v656
    %v658 = vrot.slane %v649, %v657
    %v661 = vadd.f32 %v645, %v654
    %v662 = vadd.f32 %v647, %v658
    %v663 = vld [vmem:[#allocation10] sm:$0xff]
    %v664 = vld [vmem:[#allocation5 + $0x110] sm:$0xff]
    %v665 = vld [vmem:[#allocation5 + $0x118] sm:$0xff]
    %v666 = vld [vmem:[#allocation5 + $0x130] sm:$0xff]
    %v667 = vld [vmem:[#allocation5 + $0x138] sm:$0xff]
    %v668 = vld [vmem:[#allocation5 + $0x150] sm:$0xff]
    %v669 = vld [vmem:[#allocation5 + $0x158] sm:$0xff]
    %v670 = vld [vmem:[#allocation5 + $0x170] sm:$0xff]
    %v671 = vld [vmem:[#allocation5 + $0x178] sm:$0xff]
    %v672 = vld [vmem:[#allocation5 + $0x190] sm:$0xff]
    %v673 = vld [vmem:[#allocation5 + $0x198] sm:$0xff]
    %v674 = vld [vmem:[#allocation5 + $0x1b0] sm:$0xff]
    %v675 = vld [vmem:[#allocation5 + $0x1b8] sm:$0xff]
    %v676 = vld [vmem:[#allocation5 + $0x1d0] sm:$0xff]
    %v677 = vld [vmem:[#allocation5 + $0x1d8] sm:$0xff]
    %v678 = vld [vmem:[#allocation5 + $0x1f0] sm:$0xff]
    %v679 = vld [vmem:[#allocation5 + $0x1f8] sm:$0xff]
    %681 = vrot.lane.b32.xlu0 %v663, 64
    %v682 = vpop.permute.xlu0 %681
    %vm683 = vcmask 523264
    %v684 = vsel %vm683, %v682, 0
    %686 = vmatprep.subr.mxu0 %v665
    %687 = vmatpush1.msra.mxu0 %v664
    %688 = vmatprep.subr.mxu0 %v667
    %689 = vmatpush1.msra.mxu0 %v666
    %690 = vmatprep.subr.mxu0 %v669
    %691 = vmatpush1.msra.mxu0 %v668
    %692 = vmatprep.subr.mxu0 %v671
    %693 = vmatpush1.msra.mxu0 %v670
    %694 = vmatprep.subr.mxu0 %v673
    %695 = vmatpush1.msra.mxu0 %v672
    %696 = vmatprep.subr.mxu0 %v675
    %697 = vmatpush1.msra.mxu0 %v674
    %698 = vmatprep.subr.mxu0 %v677
    %699 = vmatpush1.msra.mxu0 %v676
    %700 = vmatprep.subr.mxu0 %v679
    %701 = vmatpush1.msra.mxu0 %v678
    %702 = vmatprep.subr.mxu0 0.0
    %703 = vmatpush1.msra.mxu0 0.0
    %704 = vmatprep.subr.mxu0 0.0
    %705 = vmatpush1.msra.mxu0 0.0
    %706 = vmatprep.subr.mxu0 0.0
    %707 = vmatpush1.msra.mxu0 0.0
    %708 = vmatprep.subr.mxu0 0.0
    %709 = vmatpush1.msra.mxu0 0.0
    %710 = vmatprep.subr.mxu0 0.0
    %711 = vmatpush1.msra.mxu0 0.0
    %712 = vmatprep.subr.mxu0 0.0
    %713 = vmatpush1.msra.mxu0 0.0
    %714 = vmatprep.subr.mxu0 0.0
    %715 = vmatpush1.msra.mxu0 0.0
    %716 = vmatprep.subr.mxu0 0.0
    %717 = vmatpush1.msra.mxu0 0.0
    %718 = vmatprep.subr.mxu0 0.0
    %719 = vmatpush1.msra.mxu0 0.0
    %720 = vmatprep.subr.mxu0 0.0
    %721 = vmatpush1.msra.mxu0 0.0
    %722 = vmatprep.subr.mxu0 0.0
    %723 = vmatpush1.msra.mxu0 0.0
    %724 = vmatprep.subr.mxu0 0.0
    %725 = vmatpush1.msra.mxu0 0.0
    %726 = vmatprep.subr.mxu0 0.0
    %727 = vmatpush1.msra.mxu0 0.0
    %728 = vmatprep.subr.mxu0 0.0
    %729 = vmatpush1.msra.mxu0 0.0
    %730 = vmatprep.subr.mxu0 0.0
    %731 = vmatpush1.msra.mxu0 0.0
    %732 = vmatprep.subr.mxu0 0.0
    %733 = vmatpush1.msra.mxu0 0.0
    %734 = vmatprep.subr.mxu0 0.0
    %735 = vmatpush1.msra.mxu0 0.0
    %736 = vmatprep.subr.mxu0 0.0
    %737 = vmatpush1.msra.mxu0 0.0
    %738 = vmatprep.subr.mxu0 0.0
    %739 = vmatpush1.msra.mxu0 0.0
    %740 = vmatprep.subr.mxu0 0.0
    %741 = vmatpush1.msra.mxu0 0.0
    %742 = vmatprep.subr.mxu0 0.0
    %743 = vmatpush1.msra.mxu0 0.0
    %744 = vmatprep.subr.mxu0 0.0
    %745 = vmatpush1.msra.mxu0 0.0
    %746 = vmatprep.subr.mxu0 0.0
    %747 = vmatpush1.msra.mxu0 0.0
    %748 = vmatprep.subr.mxu0 0.0
    %749 = vmatpush1.msra.mxu0 0.0
    %750 = vmatprep.mubr.f32.mxu0 0.0
    %751 = vmatmul.mubr.f32.gmra.mrb[0].mxu0 %v684
    %v752 = vpop.f32.mrb[0].mxu0
    %v753 = vadd.f32 0.0, %v752
    %v754 = vpop.f32.mrb[0].mxu0
    %v755 = vadd.f32 0.0, %v754
    %756 = vdwg.mxu0
    %v757 = vadd.f32 %v661, %v753
    %v758 = vadd.f32 %v662, %v755
    %v759 = vmul.f32 %v757, 0.5
    %v760 = vmul.f32 %v758, 0.5
    %v761 = vtanh.pop %v759
    %v762 = vtanh.pop %v760
    %v763 = vmul.f32 %v761, 0.5
    %v764 = vmul.f32 %v762, 0.5
    %v765 = vadd.f32 %v763, 0.5
    %v766 = vadd.f32 %v764, 0.5
    %v767 = vtanh.pop %v758
    %v768 = vld [vmem:[#allocation11] sm:$0xff]
    %v769 = vmul.f32 %v765, %v768
    %771 = vrot.lane.b32.xlu0 %v767, 64
    %v772 = vpop.permute.xlu0 %771
    %v774 = vmul.f32 %v765, %v772
    %776 = vrot.lane.b32.xlu0 %v774, 64
    %v777 = vpop.permute.xlu0 %776
    %v779 = vadd.f32 %v769, %v777
    %v780 = vtanh.pop %v779
    %782 = vrot.lane.b32.xlu0 %v780, 64
    %v783 = vpop.permute.xlu0 %782
    %v785 = vmul.f32 %v766, %v783
    %v786 = vld [vmem:[#allocation5] sm:$0xff]
    %v787 = vld [vmem:[#allocation5 + $0x8] sm:$0xff]
    %v788 = vld [vmem:[#allocation5 + $0x20] sm:$0xff]
    %v789 = vld [vmem:[#allocation5 + $0x28] sm:$0xff]
    %v790 = vld [vmem:[#allocation5 + $0x40] sm:$0xff]
    %v791 = vld [vmem:[#allocation5 + $0x48] sm:$0xff]
    %v792 = vld [vmem:[#allocation5 + $0x60] sm:$0xff]
    %v793 = vld [vmem:[#allocation5 + $0x68] sm:$0xff]
    %v794 = vld [vmem:[#allocation5 + $0x80] sm:$0xff]
    %v795 = vld [vmem:[#allocation5 + $0x88] sm:$0xff]
    %v796 = vld [vmem:[#allocation5 + $0xa0] sm:$0xff]
    %v797 = vld [vmem:[#allocation5 + $0xa8] sm:$0xff]
    %v798 = vld [vmem:[#allocation5 + $0xc0] sm:$0xff]
    %v799 = vld [vmem:[#allocation5 + $0xc8] sm:$0xff]
    %v800 = vld [vmem:[#allocation5 + $0xe0] sm:$0xff]
    %v801 = vld [vmem:[#allocation5 + $0xe8] sm:$0xff]
    %v802 = vld [vmem:[#allocation4] sm:$0xff]
    %v803 = vld [vmem:[#allocation4 + $0x8] sm:$0xff]
    %v804 = vsel %vm683, %v663, 0
    %806 = vmatprep.subr.mxu0 %v787
    %807 = vmatpush1.msra.mxu0 %v786
    %808 = vmatprep.subr.mxu0 %v789
    %809 = vmatpush1.msra.mxu0 %v788
    %810 = vmatprep.subr.mxu0 %v791
    %811 = vmatpush1.msra.mxu0 %v790
    %812 = vmatprep.subr.mxu0 %v793
    %813 = vmatpush1.msra.mxu0 %v792
    %814 = vmatprep.subr.mxu0 %v795
    %815 = vmatpush1.msra.mxu0 %v794
    %816 = vmatprep.subr.mxu0 %v797
    %817 = vmatpush1.msra.mxu0 %v796
    %818 = vmatprep.subr.mxu0 %v799
    %819 = vmatpush1.msra.mxu0 %v798
    %820 = vmatprep.subr.mxu0 %v801
    %821 = vmatpush1.msra.mxu0 %v800
    %822 = vmatprep.subr.mxu0 0.0
    %823 = vmatpush1.msra.mxu0 0.0
    %824 = vmatprep.subr.mxu0 0.0
    %825 = vmatpush1.msra.mxu0 0.0
    %826 = vmatprep.subr.mxu0 0.0
    %827 = vmatpush1.msra.mxu0 0.0
    %828 = vmatprep.subr.mxu0 0.0
    %829 = vmatpush1.msra.mxu0 0.0
    %830 = vmatprep.subr.mxu0 0.0
    %831 = vmatpush1.msra.mxu0 0.0
    %832 = vmatprep.subr.mxu0 0.0
    %833 = vmatpush1.msra.mxu0 0.0
    %834 = vmatprep.subr.mxu0 0.0
    %835 = vmatpush1.msra.mxu0 0.0
    %836 = vmatprep.subr.mxu0 0.0
    %837 = vmatpush1.msra.mxu0 0.0
    %838 = vmatprep.subr.mxu0 0.0
    %839 = vmatpush1.msra.mxu0 0.0
    %840 = vmatprep.subr.mxu0 0.0
    %841 = vmatpush1.msra.mxu0 0.0
    %842 = vmatprep.subr.mxu0 0.0
    %843 = vmatpush1.msra.mxu0 0.0
    %844 = vmatprep.subr.mxu0 0.0
    %845 = vmatpush1.msra.mxu0 0.0
    %846 = vmatprep.subr.mxu0 0.0
    %847 = vmatpush1.msra.mxu0 0.0
    %848 = vmatprep.subr.mxu0 0.0
    %849 = vmatpush1.msra.mxu0 0.0
    %850 = vmatprep.subr.mxu0 0.0
    %851 = vmatpush1.msra.mxu0 0.0
    %852 = vmatprep.subr.mxu0 0.0
    %853 = vmatpush1.msra.mxu0 0.0
    %854 = vmatprep.subr.mxu0 0.0
    %855 = vmatpush1.msra.mxu0 0.0
    %856 = vmatprep.subr.mxu0 0.0
    %857 = vmatpush1.msra.mxu0 0.0
    %858 = vmatprep.subr.mxu0 0.0
    %859 = vmatpush1.msra.mxu0 0.0
    %860 = vmatprep.subr.mxu0 0.0
    %861 = vmatpush1.msra.mxu0 0.0
    %862 = vmatprep.subr.mxu0 0.0
    %863 = vmatpush1.msra.mxu0 0.0
    %864 = vmatprep.subr.mxu0 0.0
    %865 = vmatpush1.msra.mxu0 0.0
    %866 = vmatprep.subr.mxu0 0.0
    %867 = vmatpush1.msra.mxu0 0.0
    %868 = vmatprep.subr.mxu0 0.0
    %869 = vmatpush1.msra.mxu0 0.0
    %870 = vmatprep.mubr.f32.mxu0 0.0
    %871 = vmatmul.mubr.f32.gmra.mrb[0].mxu0 %v804
    %v872 = vpop.f32.mrb[0].mxu0
    %v873 = vadd.f32 0.0, %v872
    %v874 = vpop.f32.mrb[0].mxu0
    %v875 = vadd.f32 0.0, %v874
    %876 = vdwg.mxu0
    %v877 = vadd.f32 %v802, %v873
    %v878 = vadd.f32 %v803, %v875
    %v879 = vmul.f32 %v877, 0.5
    %v880 = vmul.f32 %v878, 0.5
    %v881 = vtanh.pop %v879
    %v882 = vtanh.pop %v880
    %v883 = vmul.f32 %v881, 0.5
    %v884 = vmul.f32 %v882, 0.5
    %v885 = vadd.f32 %v883, 0.5
    %v886 = vadd.f32 %v884, 0.5
    %v887 = vtanh.pop %v878
    %889 = vrot.lane.b32.xlu0 %v768, 64
    %v890 = vpop.permute.xlu0 %889
    %v892 = vmul.f32 %v885, %v890
    %894 = vrot.lane.b32.xlu0 %v887, 64
    %v895 = vpop.permute.xlu0 %894
    %v897 = vmul.f32 %v885, %v895
    %899 = vrot.lane.b32.xlu0 %v897, 64
    %v900 = vpop.permute.xlu0 %899
    %v902 = vadd.f32 %v892, %v900
    %v903 = vtanh.pop %v902
    %905 = vrot.lane.b32.xlu0 %v903, 64
    %v906 = vpop.permute.xlu0 %905
    %v908 = vmul.f32 %v886, %v906
    %v909 = vld [vmem:[#allocation4 + $0x10] sm:$0xff]
    %v910 = vld [vmem:[#allocation4 + $0x18] sm:$0xff]
    %v912 = vsel %vm683, %v908, 0
    %914 = vmatprep.subr.mxu0 %v787
    %915 = vmatpush1.msra.mxu0 %v786
    %916 = vmatprep.subr.mxu0 %v789
    %917 = vmatpush1.msra.mxu0 %v788
    %918 = vmatprep.subr.mxu0 %v791
    %919 = vmatpush1.msra.mxu0 %v790
    %920 = vmatprep.subr.mxu0 %v793
    %921 = vmatpush1.msra.mxu0 %v792
    %922 = vmatprep.subr.mxu0 %v795
    %923 = vmatpush1.msra.mxu0 %v794
    %924 = vmatprep.subr.mxu0 %v797
    %925 = vmatpush1.msra.mxu0 %v796
    %926 = vmatprep.subr.mxu0 %v799
    %927 = vmatpush1.msra.mxu0 %v798
    %928 = vmatprep.subr.mxu0 %v801
    %929 = vmatpush1.msra.mxu0 %v800
    %930 = vmatprep.subr.mxu0 0.0
    %931 = vmatpush1.msra.mxu0 0.0
    %932 = vmatprep.subr.mxu0 0.0
    %933 = vmatpush1.msra.mxu0 0.0
    %934 = vmatprep.subr.mxu0 0.0
    %935 = vmatpush1.msra.mxu0 0.0
    %936 = vmatprep.subr.mxu0 0.0
    %937 = vmatpush1.msra.mxu0 0.0
    %938 = vmatprep.subr.mxu0 0.0
    %939 = vmatpush1.msra.mxu0 0.0
    %940 = vmatprep.subr.mxu0 0.0
    %941 = vmatpush1.msra.mxu0 0.0
    %942 = vmatprep.subr.mxu0 0.0
    %943 = vmatpush1.msra.mxu0 0.0
    %944 = vmatprep.subr.mxu0 0.0
    %945 = vmatpush1.msra.mxu0 0.0
    %946 = vmatprep.subr.mxu0 0.0
    %947 = vmatpush1.msra.mxu0 0.0
    %948 = vmatprep.subr.mxu0 0.0
    %949 = vmatpush1.msra.mxu0 0.0
    %950 = vmatprep.subr.mxu0 0.0
    %951 = vmatpush1.msra.mxu0 0.0
    %952 = vmatprep.subr.mxu0 0.0
    %953 = vmatpush1.msra.mxu0 0.0
    %954 = vmatprep.subr.mxu0 0.0
    %955 = vmatpush1.msra.mxu0 0.0
    %956 = vmatprep.subr.mxu0 0.0
    %957 = vmatpush1.msra.mxu0 0.0
    %958 = vmatprep.subr.mxu0 0.0
    %959 = vmatpush1.msra.mxu0 0.0
    %960 = vmatprep.subr.mxu0 0.0
    %961 = vmatpush1.msra.mxu0 0.0
    %962 = vmatprep.subr.mxu0 0.0
    %963 = vmatpush1.msra.mxu0 0.0
    %964 = vmatprep.subr.mxu0 0.0
    %965 = vmatpush1.msra.mxu0 0.0
    %966 = vmatprep.subr.mxu0 0.0
    %967 = vmatpush1.msra.mxu0 0.0
    %968 = vmatprep.subr.mxu0 0.0
    %969 = vmatpush1.msra.mxu0 0.0
    %970 = vmatprep.subr.mxu0 0.0
    %971 = vmatpush1.msra.mxu0 0.0
    %972 = vmatprep.subr.mxu0 0.0
    %973 = vmatpush1.msra.mxu0 0.0
    %974 = vmatprep.subr.mxu0 0.0
    %975 = vmatpush1.msra.mxu0 0.0
    %976 = vmatprep.subr.mxu0 0.0
    %977 = vmatpush1.msra.mxu0 0.0
    %978 = vmatprep.mubr.f32.mxu0 0.0
    %979 = vmatmul.mubr.f32.gmra.mrb[0].mxu0 %v912
    %v980 = vpop.f32.mrb[0].mxu0
    %v981 = vadd.f32 0.0, %v980
    %v982 = vpop.f32.mrb[0].mxu0
    %v983 = vadd.f32 0.0, %v982
    %984 = vdwg.mxu0
    %v985 = vadd.f32 %v909, %v981
    %v986 = vadd.f32 %v910, %v983
    %v987 = vmul.f32 %v985, 0.5
    %v988 = vmul.f32 %v986, 0.5
    %v989 = vtanh.pop %v987
    %v990 = vtanh.pop %v988
    %v991 = vmul.f32 %v989, 0.5
    %v992 = vmul.f32 %v990, 0.5
    %v993 = vadd.f32 %v991, 0.5
    %v994 = vadd.f32 %v992, 0.5
    %v995 = vtanh.pop %v986
    %v996 = vmul.f32 %v993, %v902
    %998 = vrot.lane.b32.xlu0 %v995, 64
    %v999 = vpop.permute.xlu0 %998
    %v1001 = vmul.f32 %v993, %v999
    %1003 = vrot.lane.b32.xlu0 %v1001, 64
    %v1004 = vpop.permute.xlu0 %1003
    %v1006 = vadd.f32 %v996, %v1004
    %v1007 = vtanh.pop %v1006
    %1009 = vrot.lane.b32.xlu0 %v1007, 64
    %v1010 = vpop.permute.xlu0 %1009
    %v1012 = vmul.f32 %v994, %v1010
    %v1013 = vld [vmem:[#allocation4 + $0x20] sm:$0xff]
    %v1014 = vld [vmem:[#allocation4 + $0x28] sm:$0xff]
    %v1016 = vsel %vm683, %v1012, 0
    %1018 = vmatprep.subr.mxu0 %v787
    %1019 = vmatpush1.msra.mxu0 %v786
    %1020 = vmatprep.subr.mxu0 %v789
    %1021 = vmatpush1.msra.mxu0 %v788
    %1022 = vmatprep.subr.mxu0 %v791
    %1023 = vmatpush1.msra.mxu0 %v790
    %1024 = vmatprep.subr.mxu0 %v793
    %1025 = vmatpush1.msra.mxu0 %v792
    %1026 = vmatprep.subr.mxu0 %v795
    %1027 = vmatpush1.msra.mxu0 %v794
    %1028 = vmatprep.subr.mxu0 %v797
    %1029 = vmatpush1.msra.mxu0 %v796
    %1030 = vmatprep.subr.mxu0 %v799
    %1031 = vmatpush1.msra.mxu0 %v798
    %1032 = vmatprep.subr.mxu0 %v801
    %1033 = vmatpush1.msra.mxu0 %v800
    %1034 = vmatprep.subr.mxu0 0.0
    %1035 = vmatpush1.msra.mxu0 0.0
    %1036 = vmatprep.subr.mxu0 0.0
    %1037 = vmatpush1.msra.mxu0 0.0
    %1038 = vmatprep.subr.mxu0 0.0
    %1039 = vmatpush1.msra.mxu0 0.0
    %1040 = vmatprep.subr.mxu0 0.0
    %1041 = vmatpush1.msra.mxu0 0.0
    %1042 = vmatprep.subr.mxu0 0.0
    %1043 = vmatpush1.msra.mxu0 0.0
    %1044 = vmatprep.subr.mxu0 0.0
    %1045 = vmatpush1.msra.mxu0 0.0
    %1046 = vmatprep.subr.mxu0 0.0
    %1047 = vmatpush1.msra.mxu0 0.0
    %1048 = vmatprep.subr.mxu0 0.0
    %1049 = vmatpush1.msra.mxu0 0.0
    %1050 = vmatprep.subr.mxu0 0.0
    %1051 = vmatpush1.msra.mxu0 0.0
    %1052 = vmatprep.subr.mxu0 0.0
    %1053 = vmatpush1.msra.mxu0 0.0
    %1054 = vmatprep.subr.mxu0 0.0
    %1055 = vmatpush1.msra.mxu0 0.0
    %1056 = vmatprep.subr.mxu0 0.0
    %1057 = vmatpush1.msra.mxu0 0.0
    %1058 = vmatprep.subr.mxu0 0.0
    %1059 = vmatpush1.msra.mxu0 0.0
    %1060 = vmatprep.subr.mxu0 0.0
    %1061 = vmatpush1.msra.mxu0 0.0
    %1062 = vmatprep.subr.mxu0 0.0
    %1063 = vmatpush1.msra.mxu0 0.0
    %1064 = vmatprep.subr.mxu0 0.0
    %1065 = vmatpush1.msra.mxu0 0.0
    %1066 = vmatprep.subr.mxu0 0.0
    %1067 = vmatpush1.msra.mxu0 0.0
    %1068 = vmatprep.subr.mxu0 0.0
    %1069 = vmatpush1.msra.mxu0 0.0
    %1070 = vmatprep.subr.mxu0 0.0
    %1071 = vmatpush1.msra.mxu0 0.0
    %1072 = vmatprep.subr.mxu0 0.0
    %1073 = vmatpush1.msra.mxu0 0.0
    %1074 = vmatprep.subr.mxu0 0.0
    %1075 = vmatpush1.msra.mxu0 0.0
    %1076 = vmatprep.subr.mxu0 0.0
    %1077 = vmatpush1.msra.mxu0 0.0
    %1078 = vmatprep.subr.mxu0 0.0
    %1079 = vmatpush1.msra.mxu0 0.0
    %1080 = vmatprep.subr.mxu0 0.0
    %1081 = vmatpush1.msra.mxu0 0.0
    %1082 = vmatprep.mubr.f32.mxu0 0.0
    %1083 = vmatmul.mubr.f32.gmra.mrb[0].mxu0 %v1016
    %v1084 = vpop.f32.mrb[0].mxu0
    %v1085 = vadd.f32 0.0, %v1084
    %v1086 = vpop.f32.mrb[0].mxu0
    %v1087 = vadd.f32 0.0, %v1086
    %1088 = vdwg.mxu0
    %v1089 = vadd.f32 %v1013, %v1085
    %v1090 = vadd.f32 %v1014, %v1087
    %v1091 = vmul.f32 %v1089, 0.5
    %v1092 = vmul.f32 %v1090, 0.5
    %v1093 = vtanh.pop %v1091
    %v1094 = vtanh.pop %v1092
    %v1095 = vmul.f32 %v1093, 0.5
    %v1096 = vmul.f32 %v1094, 0.5
    %v1097 = vadd.f32 %v1095, 0.5
    %v1098 = vadd.f32 %v1096, 0.5
    %v1099 = vtanh.pop %v1090
    %v1100 = vmul.f32 %v1097, %v1006
    %1102 = vrot.lane.b32.xlu0 %v1099, 64
    %v1103 = vpop.permute.xlu0 %1102
    %v1105 = vmul.f32 %v1097, %v1103
    %1107 = vrot.lane.b32.xlu0 %v1105, 64
    %v1108 = vpop.permute.xlu0 %1107
    %v1110 = vadd.f32 %v1100, %v1108
    %v1111 = vtanh.pop %v1110
    %1113 = vrot.lane.b32.xlu0 %v1111, 64
    %v1114 = vpop.permute.xlu0 %1113
    %v1116 = vmul.f32 %v1098, %v1114
    %v1117 = vld [vmem:[#allocation4 + $0x30] sm:$0xff]
    %v1118 = vld [vmem:[#allocation4 + $0x38] sm:$0xff]
    %v1120 = vsel %vm683, %v1116, 0
    %1122 = vmatprep.subr.mxu0 %v787
    %1123 = vmatpush1.msra.mxu0 %v786
    %1124 = vmatprep.subr.mxu0 %v789
    %1125 = vmatpush1.msra.mxu0 %v788
    %1126 = vmatprep.subr.mxu0 %v791
    %1127 = vmatpush1.msra.mxu0 %v790
    %1128 = vmatprep.subr.mxu0 %v793
    %1129 = vmatpush1.msra.mxu0 %v792
    %1130 = vmatprep.subr.mxu0 %v795
    %1131 = vmatpush1.msra.mxu0 %v794
    %1132 = vmatprep.subr.mxu0 %v797
    %1133 = vmatpush1.msra.mxu0 %v796
    %1134 = vmatprep.subr.mxu0 %v799
    %1135 = vmatpush1.msra.mxu0 %v798
    %1136 = vmatprep.subr.mxu0 %v801
    %1137 = vmatpush1.msra.mxu0 %v800
    %1138 = vmatprep.subr.mxu0 0.0
    %1139 = vmatpush1.msra.mxu0 0.0
    %1140 = vmatprep.subr.mxu0 0.0
    %1141 = vmatpush1.msra.mxu0 0.0
    %1142 = vmatprep.subr.mxu0 0.0
    %1143 = vmatpush1.msra.mxu0 0.0
    %1144 = vmatprep.subr.mxu0 0.0
    %1145 = vmatpush1.msra.mxu0 0.0
    %1146 = vmatprep.subr.mxu0 0.0
    %1147 = vmatpush1.msra.mxu0 0.0
    %1148 = vmatprep.subr.mxu0 0.0
    %1149 = vmatpush1.msra.mxu0 0.0
    %1150 = vmatprep.subr.mxu0 0.0
    %1151 = vmatpush1.msra.mxu0 0.0
    %1152 = vmatprep.subr.mxu0 0.0
    %1153 = vmatpush1.msra.mxu0 0.0
    %1154 = vmatprep.subr.mxu0 0.0
    %1155 = vmatpush1.msra.mxu0 0.0
    %1156 = vmatprep.subr.mxu0 0.0
    %1157 = vmatpush1.msra.mxu0 0.0
    %1158 = vmatprep.subr.mxu0 0.0
    %1159 = vmatpush1.msra.mxu0 0.0
    %1160 = vmatprep.subr.mxu0 0.0
    %1161 = vmatpush1.msra.mxu0 0.0
    %1162 = vmatprep.subr.mxu0 0.0
    %1163 = vmatpush1.msra.mxu0 0.0
    %1164 = vmatprep.subr.mxu0 0.0
    %1165 = vmatpush1.msra.mxu0 0.0
    %1166 = vmatprep.subr.mxu0 0.0
    %1167 = vmatpush1.msra.mxu0 0.0
    %1168 = vmatprep.subr.mxu0 0.0
    %1169 = vmatpush1.msra.mxu0 0.0
    %1170 = vmatprep.subr.mxu0 0.0
    %1171 = vmatpush1.msra.mxu0 0.0
    %1172 = vmatprep.subr.mxu0 0.0
    %1173 = vmatpush1.msra.mxu0 0.0
    %1174 = vmatprep.subr.mxu0 0.0
    %1175 = vmatpush1.msra.mxu0 0.0
    %1176 = vmatprep.subr.mxu0 0.0
    %1177 = vmatpush1.msra.mxu0 0.0
    %1178 = vmatprep.subr.mxu0 0.0
    %1179 = vmatpush1.msra.mxu0 0.0
    %1180 = vmatprep.subr.mxu0 0.0
    %1181 = vmatpush1.msra.mxu0 0.0
    %1182 = vmatprep.subr.mxu0 0.0
    %1183 = vmatpush1.msra.mxu0 0.0
    %1184 = vmatprep.subr.mxu0 0.0
    %1185 = vmatpush1.msra.mxu0 0.0
    %1186 = vmatprep.mubr.f32.mxu0 0.0
    %1187 = vmatmul.mubr.f32.gmra.mrb[0].mxu0 %v1120
    %v1188 = vpop.f32.mrb[0].mxu0
    %v1189 = vadd.f32 0.0, %v1188
    %v1190 = vpop.f32.mrb[0].mxu0
    %v1191 = vadd.f32 0.0, %v1190
    %1192 = vdwg.mxu0
    %v1193 = vadd.f32 %v1117, %v1189
    %v1194 = vadd.f32 %v1118, %v1191
    %v1195 = vmul.f32 %v1193, 0.5
    %v1196 = vmul.f32 %v1194, 0.5
    %v1197 = vtanh.pop %v1195
    %v1198 = vtanh.pop %v1196
    %v1199 = vmul.f32 %v1197, 0.5
    %v1200 = vmul.f32 %v1198, 0.5
    %v1201 = vadd.f32 %v1199, 0.5
    %v1202 = vadd.f32 %v1200, 0.5
    %v1203 = vtanh.pop %v1194
    %v1204 = vmul.f32 %v1201, %v1110
    %1206 = vrot.lane.b32.xlu0 %v1203, 64
    %v1207 = vpop.permute.xlu0 %1206
    %v1209 = vmul.f32 %v1201, %v1207
    %1211 = vrot.lane.b32.xlu0 %v1209, 64
    %v1212 = vpop.permute.xlu0 %1211
    %v1214 = vadd.f32 %v1204, %v1212
    %v1215 = vtanh.pop %v1214
    %1217 = vrot.lane.b32.xlu0 %v1215, 64
    %v1218 = vpop.permute.xlu0 %1217
    %v1220 = vmul.f32 %v1202, %v1218
    %v1221 = vld [vmem:[#allocation4 + $0x40] sm:$0xff]
    %v1222 = vld [vmem:[#allocation4 + $0x48] sm:$0xff]
    %v1224 = vsel %vm683, %v1220, 0
    %1226 = vmatprep.subr.mxu0 %v787
    %1227 = vmatpush1.msra.mxu0 %v786
    %1228 = vmatprep.subr.mxu0 %v789
    %1229 = vmatpush1.msra.mxu0 %v788
    %1230 = vmatprep.subr.mxu0 %v791
    %1231 = vmatpush1.msra.mxu0 %v790
    %1232 = vmatprep.subr.mxu0 %v793
    %1233 = vmatpush1.msra.mxu0 %v792
    %1234 = vmatprep.subr.mxu0 %v795
    %1235 = vmatpush1.msra.mxu0 %v794
    %1236 = vmatprep.subr.mxu0 %v797
    %1237 = vmatpush1.msra.mxu0 %v796
    %1238 = vmatprep.subr.mxu0 %v799
    %1239 = vmatpush1.msra.mxu0 %v798
    %1240 = vmatprep.subr.mxu0 %v801
    %1241 = vmatpush1.msra.mxu0 %v800
    %1242 = vmatprep.subr.mxu0 0.0
    %1243 = vmatpush1.msra.mxu0 0.0
    %1244 = vmatprep.subr.mxu0 0.0
    %1245 = vmatpush1.msra.mxu0 0.0
    %1246 = vmatprep.subr.mxu0 0.0
    %1247 = vmatpush1.msra.mxu0 0.0
    %1248 = vmatprep.subr.mxu0 0.0
    %1249 = vmatpush1.msra.mxu0 0.0
    %1250 = vmatprep.subr.mxu0 0.0
    %1251 = vmatpush1.msra.mxu0 0.0
    %1252 = vmatprep.subr.mxu0 0.0
    %1253 = vmatpush1.msra.mxu0 0.0
    %1254 = vmatprep.subr.mxu0 0.0
    %1255 = vmatpush1.msra.mxu0 0.0
    %1256 = vmatprep.subr.mxu0 0.0
    %1257 = vmatpush1.msra.mxu0 0.0
    %1258 = vmatprep.subr.mxu0 0.0
    %1259 = vmatpush1.msra.mxu0 0.0
    %1260 = vmatprep.subr.mxu0 0.0
    %1261 = vmatpush1.msra.mxu0 0.0
    %1262 = vmatprep.subr.mxu0 0.0
    %1263 = vmatpush1.msra.mxu0 0.0
    %1264 = vmatprep.subr.mxu0 0.0
    %1265 = vmatpush1.msra.mxu0 0.0
    %1266 = vmatprep.subr.mxu0 0.0
    %1267 = vmatpush1.msra.mxu0 0.0
    %1268 = vmatprep.subr.mxu0 0.0
    %1269 = vmatpush1.msra.mxu0 0.0
    %1270 = vmatprep.subr.mxu0 0.0
    %1271 = vmatpush1.msra.mxu0 0.0
    %1272 = vmatprep.subr.mxu0 0.0
    %1273 = vmatpush1.msra.mxu0 0.0
    %1274 = vmatprep.subr.mxu0 0.0
    %1275 = vmatpush1.msra.mxu0 0.0
    %1276 = vmatprep.subr.mxu0 0.0
    %1277 = vmatpush1.msra.mxu0 0.0
    %1278 = vmatprep.subr.mxu0 0.0
    %1279 = vmatpush1.msra.mxu0 0.0
    %1280 = vmatprep.subr.mxu0 0.0
    %1281 = vmatpush1.msra.mxu0 0.0
    %1282 = vmatprep.subr.mxu0 0.0
    %1283 = vmatpush1.msra.mxu0 0.0
    %1284 = vmatprep.subr.mxu0 0.0
    %1285 = vmatpush1.msra.mxu0 0.0
    %1286 = vmatprep.subr.mxu0 0.0
    %1287 = vmatpush1.msra.mxu0 0.0
    %1288 = vmatprep.subr.mxu0 0.0
    %1289 = vmatpush1.msra.mxu0 0.0
    %1290 = vmatprep.mubr.f32.mxu0 0.0
    %1291 = vmatmul.mubr.f32.gmra.mrb[0].mxu0 %v1224
    %v1292 = vpop.f32.mrb[0].mxu0
    %v1293 = vadd.f32 0.0, %v1292
    %v1294 = vpop.f32.mrb[0].mxu0
    %v1295 = vadd.f32 0.0, %v1294
    %1296 = vdwg.mxu0
    %v1297 = vadd.f32 %v1221, %v1293
    %v1298 = vadd.f32 %v1222, %v1295
    %v1299 = vmul.f32 %v1297, 0.5
    %v1300 = vmul.f32 %v1298, 0.5
    %v1301 = vtanh.pop %v1299
    %v1302 = vtanh.pop %v1300
    %v1303 = vmul.f32 %v1301, 0.5
    %v1304 = vmul.f32 %v1302, 0.5
    %v1305 = vadd.f32 %v1303, 0.5
    %v1306 = vadd.f32 %v1304, 0.5
    %v1307 = vtanh.pop %v1298
    %v1308 = vmul.f32 %v1305, %v1214
    %1310 = vrot.lane.b32.xlu0 %v1307, 64
    %v1311 = vpop.permute.xlu0 %1310
    %v1313 = vmul.f32 %v1305, %v1311
    %1315 = vrot.lane.b32.xlu0 %v1313, 64
    %v1316 = vpop.permute.xlu0 %1315
    %v1318 = vadd.f32 %v1308, %v1316
    %v1319 = vtanh.pop %v1318
    %1321 = vrot.lane.b32.xlu0 %v1319, 64
    %v1322 = vpop.permute.xlu0 %1321
    %v1324 = vmul.f32 %v1306, %v1322
    %v1325 = vld [vmem:[#allocation4 + $0x50] sm:$0xff]
    %v1326 = vld [vmem:[#allocation4 + $0x58] sm:$0xff]
    %v1328 = vsel %vm683, %v1324, 0
    %1330 = vmatprep.subr.mxu0 %v787
    %1331 = vmatpush1.msra.mxu0 %v786
    %1332 = vmatprep.subr.mxu0 %v789
    %1333 = vmatpush1.msra.mxu0 %v788
    %1334 = vmatprep.subr.mxu0 %v791
    %1335 = vmatpush1.msra.mxu0 %v790
    %1336 = vmatprep.subr.mxu0 %v793
    %1337 = vmatpush1.msra.mxu0 %v792
    %1338 = vmatprep.subr.mxu0 %v795
    %1339 = vmatpush1.msra.mxu0 %v794
    %1340 = vmatprep.subr.mxu0 %v797
    %1341 = vmatpush1.msra.mxu0 %v796
    %1342 = vmatprep.subr.mxu0 %v799
    %1343 = vmatpush1.msra.mxu0 %v798
    %1344 = vmatprep.subr.mxu0 %v801
    %1345 = vmatpush1.msra.mxu0 %v800
    %1346 = vmatprep.subr.mxu0 0.0
    %1347 = vmatpush1.msra.mxu0 0.0
    %1348 = vmatprep.subr.mxu0 0.0
    %1349 = vmatpush1.msra.mxu0 0.0
    %1350 = vmatprep.subr.mxu0 0.0
    %1351 = vmatpush1.msra.mxu0 0.0
    %1352 = vmatprep.subr.mxu0 0.0
    %1353 = vmatpush1.msra.mxu0 0.0
    %1354 = vmatprep.subr.mxu0 0.0
    %1355 = vmatpush1.msra.mxu0 0.0
    %1356 = vmatprep.subr.mxu0 0.0
    %1357 = vmatpush1.msra.mxu0 0.0
    %1358 = vmatprep.subr.mxu0 0.0
    %1359 = vmatpush1.msra.mxu0 0.0
    %1360 = vmatprep.subr.mxu0 0.0
    %1361 = vmatpush1.msra.mxu0 0.0
    %1362 = vmatprep.subr.mxu0 0.0
    %1363 = vmatpush1.msra.mxu0 0.0
    %1364 = vmatprep.subr.mxu0 0.0
    %1365 = vmatpush1.msra.mxu0 0.0
    %1366 = vmatprep.subr.mxu0 0.0
    %1367 = vmatpush1.msra.mxu0 0.0
    %1368 = vmatprep.subr.mxu0 0.0
    %1369 = vmatpush1.msra.mxu0 0.0
    %1370 = vmatprep.subr.mxu0 0.0
    %1371 = vmatpush1.msra.mxu0 0.0
    %1372 = vmatprep.subr.mxu0 0.0
    %1373 = vmatpush1.msra.mxu0 0.0
    %1374 = vmatprep.subr.mxu0 0.0
    %1375 = vmatpush1.msra.mxu0 0.0
    %1376 = vmatprep.subr.mxu0 0.0
    %1377 = vmatpush1.msra.mxu0 0.0
    %1378 = vmatprep.subr.mxu0 0.0
    %1379 = vmatpush1.msra.mxu0 0.0
    %1380 = vmatprep.subr.mxu0 0.0
    %1381 = vmatpush1.msra.mxu0 0.0
    %1382 = vmatprep.subr.mxu0 0.0
    %1383 = vmatpush1.msra.mxu0 0.0
    %1384 = vmatprep.subr.mxu0 0.0
    %1385 = vmatpush1.msra.mxu0 0.0
    %1386 = vmatprep.subr.mxu0 0.0
    %1387 = vmatpush1.msra.mxu0 0.0
    %1388 = vmatprep.subr.mxu0 0.0
    %1389 = vmatpush1.msra.mxu0 0.0
    %1390 = vmatprep.subr.mxu0 0.0
    %1391 = vmatpush1.msra.mxu0 0.0
    %1392 = vmatprep.subr.mxu0 0.0
    %1393 = vmatpush1.msra.mxu0 0.0
    %1394 = vmatprep.mubr.f32.mxu0 0.0
    %1395 = vmatmul.mubr.f32.gmra.mrb[0].mxu0 %v1328
    %v1396 = vpop.f32.mrb[0].mxu0
    %v1397 = vadd.f32 0.0, %v1396
    %v1398 = vpop.f32.mrb[0].mxu0
    %v1399 = vadd.f32 0.0, %v1398
    %1400 = vdwg.mxu0
    %v1401 = vadd.f32 %v1325, %v1397
    %v1402 = vadd.f32 %v1326, %v1399
    %v1403 = vmul.f32 %v1401, 0.5
    %v1404 = vmul.f32 %v1402, 0.5
    %v1405 = vtanh.pop %v1403
    %v1406 = vtanh.pop %v1404
    %v1407 = vmul.f32 %v1405, 0.5
    %v1408 = vmul.f32 %v1406, 0.5
    %v1409 = vadd.f32 %v1407, 0.5
    %v1410 = vadd.f32 %v1408, 0.5
    %v1411 = vtanh.pop %v1402
    %v1412 = vmul.f32 %v1409, %v1318
    %1414 = vrot.lane.b32.xlu0 %v1411, 64
    %v1415 = vpop.permute.xlu0 %1414
    %v1417 = vmul.f32 %v1409, %v1415
    %1419 = vrot.lane.b32.xlu0 %v1417, 64
    %v1420 = vpop.permute.xlu0 %1419
    %v1422 = vadd.f32 %v1412, %v1420
    %v1423 = vtanh.pop %v1422
    %1425 = vrot.lane.b32.xlu0 %v1423, 64
    %v1426 = vpop.permute.xlu0 %1425
    %v1428 = vmul.f32 %v1410, %v1426
    %v1429 = vld [vmem:[#allocation4 + $0x60] sm:$0xff]
    %v1430 = vld [vmem:[#allocation4 + $0x68] sm:$0xff]
    %v1432 = vsel %vm683, %v1428, 0
    %1434 = vmatprep.subr.mxu0 %v787
    %1435 = vmatpush1.msra.mxu0 %v786
    %1436 = vmatprep.subr.mxu0 %v789
    %1437 = vmatpush1.msra.mxu0 %v788
    %1438 = vmatprep.subr.mxu0 %v791
    %1439 = vmatpush1.msra.mxu0 %v790
    %1440 = vmatprep.subr.mxu0 %v793
    %1441 = vmatpush1.msra.mxu0 %v792
    %1442 = vmatprep.subr.mxu0 %v795
    %1443 = vmatpush1.msra.mxu0 %v794
    %1444 = vmatprep.subr.mxu0 %v797
    %1445 = vmatpush1.msra.mxu0 %v796
    %1446 = vmatprep.subr.mxu0 %v799
    %1447 = vmatpush1.msra.mxu0 %v798
    %1448 = vmatprep.subr.mxu0 %v801
    %1449 = vmatpush1.msra.mxu0 %v800
    %1450 = vmatprep.subr.mxu0 0.0
    %1451 = vmatpush1.msra.mxu0 0.0
    %1452 = vmatprep.subr.mxu0 0.0
    %1453 = vmatpush1.msra.mxu0 0.0
    %1454 = vmatprep.subr.mxu0 0.0
    %1455 = vmatpush1.msra.mxu0 0.0
    %1456 = vmatprep.subr.mxu0 0.0
    %1457 = vmatpush1.msra.mxu0 0.0
    %1458 = vmatprep.subr.mxu0 0.0
    %1459 = vmatpush1.msra.mxu0 0.0
    %1460 = vmatprep.subr.mxu0 0.0
    %1461 = vmatpush1.msra.mxu0 0.0
    %1462 = vmatprep.subr.mxu0 0.0
    %1463 = vmatpush1.msra.mxu0 0.0
    %1464 = vmatprep.subr.mxu0 0.0
    %1465 = vmatpush1.msra.mxu0 0.0
    %1466 = vmatprep.subr.mxu0 0.0
    %1467 = vmatpush1.msra.mxu0 0.0
    %1468 = vmatprep.subr.mxu0 0.0
    %1469 = vmatpush1.msra.mxu0 0.0
    %1470 = vmatprep.subr.mxu0 0.0
    %1471 = vmatpush1.msra.mxu0 0.0
    %1472 = vmatprep.subr.mxu0 0.0
    %1473 = vmatpush1.msra.mxu0 0.0
    %1474 = vmatprep.subr.mxu0 0.0
    %1475 = vmatpush1.msra.mxu0 0.0
    %1476 = vmatprep.subr.mxu0 0.0
    %1477 = vmatpush1.msra.mxu0 0.0
    %1478 = vmatprep.subr.mxu0 0.0
    %1479 = vmatpush1.msra.mxu0 0.0
    %1480 = vmatprep.subr.mxu0 0.0
    %1481 = vmatpush1.msra.mxu0 0.0
    %1482 = vmatprep.subr.mxu0 0.0
    %1483 = vmatpush1.msra.mxu0 0.0
    %1484 = vmatprep.subr.mxu0 0.0
    %1485 = vmatpush1.msra.mxu0 0.0
    %1486 = vmatprep.subr.mxu0 0.0
    %1487 = vmatpush1.msra.mxu0 0.0
    %1488 = vmatprep.subr.mxu0 0.0
    %1489 = vmatpush1.msra.mxu0 0.0
    %1490 = vmatprep.subr.mxu0 0.0
    %1491 = vmatpush1.msra.mxu0 0.0
    %1492 = vmatprep.subr.mxu0 0.0
    %1493 = vmatpush1.msra.mxu0 0.0
    %1494 = vmatprep.subr.mxu0 0.0
    %1495 = vmatpush1.msra.mxu0 0.0
    %1496 = vmatprep.subr.mxu0 0.0
    %1497 = vmatpush1.msra.mxu0 0.0
    %1498 = vmatprep.mubr.f32.mxu0 0.0
    %1499 = vmatmul.mubr.f32.gmra.mrb[0].mxu0 %v1432
    %v1500 = vpop.f32.mrb[0].mxu0
    %v1501 = vadd.f32 0.0, %v1500
    %v1502 = vpop.f32.mrb[0].mxu0
    %v1503 = vadd.f32 0.0, %v1502
    %1504 = vdwg.mxu0
    %v1505 = vadd.f32 %v1429, %v1501
    %v1506 = vadd.f32 %v1430, %v1503
    %v1507 = vmul.f32 %v1505, 0.5
    %v1508 = vmul.f32 %v1506, 0.5
    %v1509 = vtanh.pop %v1507
    %v1510 = vtanh.pop %v1508
    %v1511 = vmul.f32 %v1509, 0.5
    %v1512 = vmul.f32 %v1510, 0.5
    %v1513 = vadd.f32 %v1511, 0.5
    %v1514 = vadd.f32 %v1512, 0.5
    %v1515 = vtanh.pop %v1506
    %v1516 = vmul.f32 %v1513, %v1422
    %1518 = vrot.lane.b32.xlu0 %v1515, 64
    %v1519 = vpop.permute.xlu0 %1518
    %v1521 = vmul.f32 %v1513, %v1519
    %1523 = vrot.lane.b32.xlu0 %v1521, 64
    %v1524 = vpop.permute.xlu0 %1523
    %v1526 = vadd.f32 %v1516, %v1524
    %v1527 = vtanh.pop %v1526
    %1529 = vrot.lane.b32.xlu0 %v1527, 64
    %v1530 = vpop.permute.xlu0 %1529
    %v1532 = vmul.f32 %v1514, %v1530
    %v1533 = vld [vmem:[#allocation4 + $0x70] sm:$0xff]
    %v1534 = vld [vmem:[#allocation4 + $0x78] sm:$0xff]
    %v1536 = vsel %vm683, %v1532, 0
    %1538 = vmatprep.subr.mxu0 %v787
    %1539 = vmatpush1.msra.mxu0 %v786
    %1540 = vmatprep.subr.mxu0 %v789
    %1541 = vmatpush1.msra.mxu0 %v788
    %1542 = vmatprep.subr.mxu0 %v791
    %1543 = vmatpush1.msra.mxu0 %v790
    %1544 = vmatprep.subr.mxu0 %v793
    %1545 = vmatpush1.msra.mxu0 %v792
    %1546 = vmatprep.subr.mxu0 %v795
    %1547 = vmatpush1.msra.mxu0 %v794
    %1548 = vmatprep.subr.mxu0 %v797
    %1549 = vmatpush1.msra.mxu0 %v796
    %1550 = vmatprep.subr.mxu0 %v799
    %1551 = vmatpush1.msra.mxu0 %v798
    %1552 = vmatprep.subr.mxu0 %v801
    %1553 = vmatpush1.msra.mxu0 %v800
    %1554 = vmatprep.subr.mxu0 0.0
    %1555 = vmatpush1.msra.mxu0 0.0
    %1556 = vmatprep.subr.mxu0 0.0
    %1557 = vmatpush1.msra.mxu0 0.0
    %1558 = vmatprep.subr.mxu0 0.0
    %1559 = vmatpush1.msra.mxu0 0.0
    %1560 = vmatprep.subr.mxu0 0.0
    %1561 = vmatpush1.msra.mxu0 0.0
    %1562 = vmatprep.subr.mxu0 0.0
    %1563 = vmatpush1.msra.mxu0 0.0
    %1564 = vmatprep.subr.mxu0 0.0
    %1565 = vmatpush1.msra.mxu0 0.0
    %1566 = vmatprep.subr.mxu0 0.0
    %1567 = vmatpush1.msra.mxu0 0.0
    %1568 = vmatprep.subr.mxu0 0.0
    %1569 = vmatpush1.msra.mxu0 0.0
    %1570 = vmatprep.subr.mxu0 0.0
    %1571 = vmatpush1.msra.mxu0 0.0
    %1572 = vmatprep.subr.mxu0 0.0
    %1573 = vmatpush1.msra.mxu0 0.0
    %1574 = vmatprep.subr.mxu0 0.0
    %1575 = vmatpush1.msra.mxu0 0.0
    %1576 = vmatprep.subr.mxu0 0.0
    %1577 = vmatpush1.msra.mxu0 0.0
    %1578 = vmatprep.subr.mxu0 0.0
    %1579 = vmatpush1.msra.mxu0 0.0
    %1580 = vmatprep.subr.mxu0 0.0
    %1581 = vmatpush1.msra.mxu0 0.0
    %1582 = vmatprep.subr.mxu0 0.0
    %1583 = vmatpush1.msra.mxu0 0.0
    %1584 = vmatprep.subr.mxu0 0.0
    %1585 = vmatpush1.msra.mxu0 0.0
    %1586 = vmatprep.subr.mxu0 0.0
    %1587 = vmatpush1.msra.mxu0 0.0
    %1588 = vmatprep.subr.mxu0 0.0
    %1589 = vmatpush1.msra.mxu0 0.0
    %1590 = vmatprep.subr.mxu0 0.0
    %1591 = vmatpush1.msra.mxu0 0.0
    %1592 = vmatprep.subr.mxu0 0.0
    %1593 = vmatpush1.msra.mxu0 0.0
    %1594 = vmatprep.subr.mxu0 0.0
    %1595 = vmatpush1.msra.mxu0 0.0
    %1596 = vmatprep.subr.mxu0 0.0
    %1597 = vmatpush1.msra.mxu0 0.0
    %1598 = vmatprep.subr.mxu0 0.0
    %1599 = vmatpush1.msra.mxu0 0.0
    %1600 = vmatprep.subr.mxu0 0.0
    %1601 = vmatpush1.msra.mxu0 0.0
    %1602 = vmatprep.mubr.f32.mxu0 0.0
    %1603 = vmatmul.mubr.f32.gmra.mrb[0].mxu0 %v1536
    %v1604 = vpop.f32.mrb[0].mxu0
    %v1605 = vadd.f32 0.0, %v1604
    %v1606 = vpop.f32.mrb[0].mxu0
    %v1607 = vadd.f32 0.0, %v1606
    %1608 = vdwg.mxu0
    %v1609 = vadd.f32 %v1533, %v1605
    %v1610 = vadd.f32 %v1534, %v1607
    %v1611 = vmul.f32 %v1609, 0.5
    %v1612 = vmul.f32 %v1610, 0.5
    %v1613 = vtanh.pop %v1611
    %v1614 = vtanh.pop %v1612
    %v1615 = vmul.f32 %v1613, 0.5
    %v1616 = vmul.f32 %v1614, 0.5
    %v1617 = vadd.f32 %v1615, 0.5
    %v1618 = vadd.f32 %v1616, 0.5
    %v1619 = vtanh.pop %v1610
    %v1620 = vmul.f32 %v1617, %v1526
    %1622 = vrot.lane.b32.xlu0 %v1619, 64
    %v1623 = vpop.permute.xlu0 %1622
    %v1625 = vmul.f32 %v1617, %v1623
    %1627 = vrot.lane.b32.xlu0 %v1625, 64
    %v1628 = vpop.permute.xlu0 %1627
    %v1630 = vadd.f32 %v1620, %v1628
    %v1631 = vtanh.pop %v1630
    %1633 = vrot.lane.b32.xlu0 %v1631, 64
    %v1634 = vpop.permute.xlu0 %1633
    %v1636 = vmul.f32 %v1618, %v1634
    %v1637 = vld [vmem:[%s8] sm:$0xff]
    %v1638 = vld [vmem:[%s8 + $0x8] sm:$0xff]
    %v1639 = vld [vmem:[%s8 + $0x10] sm:$0xff]
    %v1640 = vld [vmem:[%s8 + $0x18] sm:$0xff]
    %v1641 = vld [vmem:[%s8 + $0x20] sm:$0xff]
    %v1642 = vld [vmem:[%s8 + $0x28] sm:$0xff]
    %v1643 = vld [vmem:[%s8 + $0x30] sm:$0xff]
    %v1644 = vld [vmem:[%s8 + $0x38] sm:$0xff]
    %v1645 = vld [vmem:[%s8 + $0x40] sm:$0xff]
    %v1646 = vld [vmem:[%s8 + $0x48] sm:$0xff]
    %v1647 = vld [vmem:[%s8 + $0x50] sm:$0xff]
    %v1648 = vld [vmem:[%s8 + $0x58] sm:$0xff]
    %v1649 = vld [vmem:[%s8 + $0x60] sm:$0xff]
    %v1650 = vld [vmem:[%s8 + $0x68] sm:$0xff]
    %v1651 = vld [vmem:[%s8 + $0x70] sm:$0xff]
    %v1652 = vld [vmem:[%s8 + $0x78] sm:$0xff]
    %v1654 = vsel %vm683, %v785, 0
    %1656 = vmatprep.subr.mxu0 0.0
    %1657 = vmatpush1.msra.mxu0 %v1645
    %1658 = vmatprep.subr.mxu0 0.0
    %1659 = vmatpush1.msra.mxu0 %v1646
    %1660 = vmatprep.subr.mxu0 0.0
    %1661 = vmatpush1.msra.mxu0 %v1647
    %1662 = vmatprep.subr.mxu0 0.0
    %1663 = vmatpush1.msra.mxu0 %v1648
    %1664 = vmatprep.subr.mxu0 0.0
    %1665 = vmatpush1.msra.mxu0 %v1649
    %1666 = vmatprep.subr.mxu0 0.0
    %1667 = vmatpush1.msra.mxu0 %v1650
    %1668 = vmatprep.subr.mxu0 0.0
    %1669 = vmatpush1.msra.mxu0 %v1651
    %1670 = vmatprep.subr.mxu0 0.0
    %1671 = vmatpush1.msra.mxu0 %v1652
    %1672 = vmatprep.subr.mxu0 0.0
    %1673 = vmatpush1.msra.mxu0 0.0
    %1674 = vmatprep.subr.mxu0 0.0
    %1675 = vmatpush1.msra.mxu0 0.0
    %1676 = vmatprep.subr.mxu0 0.0
    %1677 = vmatpush1.msra.mxu0 0.0
    %1678 = vmatprep.subr.mxu0 0.0
    %1679 = vmatpush1.msra.mxu0 0.0
    %1680 = vmatprep.subr.mxu0 0.0
    %1681 = vmatpush1.msra.mxu0 0.0
    %1682 = vmatprep.subr.mxu0 0.0
    %1683 = vmatpush1.msra.mxu0 0.0
    %1684 = vmatprep.subr.mxu0 0.0
    %1685 = vmatpush1.msra.mxu0 0.0
    %1686 = vmatprep.subr.mxu0 0.0
    %1687 = vmatpush1.msra.mxu0 0.0
    %1688 = vmatprep.subr.mxu0 0.0
    %1689 = vmatpush1.msra.mxu0 0.0
    %1690 = vmatprep.subr.mxu0 0.0
    %1691 = vmatpush1.msra.mxu0 0.0
    %1692 = vmatprep.subr.mxu0 0.0
    %1693 = vmatpush1.msra.mxu0 0.0
    %1694 = vmatprep.subr.mxu0 0.0
    %1695 = vmatpush1.msra.mxu0 0.0
    %1696 = vmatprep.subr.mxu0 0.0
    %1697 = vmatpush1.msra.mxu0 0.0
    %1698 = vmatprep.subr.mxu0 0.0
    %1699 = vmatpush1.msra.mxu0 0.0
    %1700 = vmatprep.subr.mxu0 0.0
    %1701 = vmatpush1.msra.mxu0 0.0
    %1702 = vmatprep.subr.mxu0 0.0
    %1703 = vmatpush1.msra.mxu0 0.0
    %1704 = vmatprep.subr.mxu0 0.0
    %1705 = vmatpush1.msra.mxu0 0.0
    %1706 = vmatprep.subr.mxu0 0.0
    %1707 = vmatpush1.msra.mxu0 0.0
    %1708 = vmatprep.subr.mxu0 0.0
    %1709 = vmatpush1.msra.mxu0 0.0
    %1710 = vmatprep.subr.mxu0 0.0
    %1711 = vmatpush1.msra.mxu0 0.0
    %1712 = vmatprep.subr.mxu0 0.0
    %1713 = vmatpush1.msra.mxu0 0.0
    %1714 = vmatprep.subr.mxu0 0.0
    %1715 = vmatpush1.msra.mxu0 0.0
    %1716 = vmatprep.subr.mxu0 0.0
    %1717 = vmatpush1.msra.mxu0 0.0
    %1718 = vmatprep.subr.mxu0 0.0
    %1719 = vmatpush1.msra.mxu0 0.0
    %1720 = vmatprep.mubr.f32.mxu0 0.0
    %1721 = vmatmul.mubr.f32.gmra.mrb[0].mxu0 %v1654
    %v1722 = vpop.f32.mrb[0].mxu0
    %v1723 = vadd.f32 0.0, %v1722
    %v1724 = vpop.f32.mrb[0].mxu0
    %1725 = vdwg.mxu0
    %v1727 = vsel %vm683, %v1636, 0
    %1729 = vmatprep.subr.mxu0 0.0
    %1730 = vmatpush1.msra.mxu0 %v1637
    %1731 = vmatprep.subr.mxu0 0.0
    %1732 = vmatpush1.msra.mxu0 %v1638
    %1733 = vmatprep.subr.mxu0 0.0
    %1734 = vmatpush1.msra.mxu0 %v1639
    %1735 = vmatprep.subr.mxu0 0.0
    %1736 = vmatpush1.msra.mxu0 %v1640
    %1737 = vmatprep.subr.mxu0 0.0
    %1738 = vmatpush1.msra.mxu0 %v1641
    %1739 = vmatprep.subr.mxu0 0.0
    %1740 = vmatpush1.msra.mxu0 %v1642
    %1741 = vmatprep.subr.mxu0 0.0
    %1742 = vmatpush1.msra.mxu0 %v1643
    %1743 = vmatprep.subr.mxu0 0.0
    %1744 = vmatpush1.msra.mxu0 %v1644
    %1745 = vmatprep.subr.mxu0 0.0
    %1746 = vmatpush1.msra.mxu0 0.0
    %1747 = vmatprep.subr.mxu0 0.0
    %1748 = vmatpush1.msra.mxu0 0.0
    %1749 = vmatprep.subr.mxu0 0.0
    %1750 = vmatpush1.msra.mxu0 0.0
    %1751 = vmatprep.subr.mxu0 0.0
    %1752 = vmatpush1.msra.mxu0 0.0
    %1753 = vmatprep.subr.mxu0 0.0
    %1754 = vmatpush1.msra.mxu0 0.0
    %1755 = vmatprep.subr.mxu0 0.0
    %1756 = vmatpush1.msra.mxu0 0.0
    %1757 = vmatprep.subr.mxu0 0.0
    %1758 = vmatpush1.msra.mxu0 0.0
    %1759 = vmatprep.subr.mxu0 0.0
    %1760 = vmatpush1.msra.mxu0 0.0
    %1761 = vmatprep.subr.mxu0 0.0
    %1762 = vmatpush1.msra.mxu0 0.0
    %1763 = vmatprep.subr.mxu0 0.0
    %1764 = vmatpush1.msra.mxu0 0.0
    %1765 = vmatprep.subr.mxu0 0.0
    %1766 = vmatpush1.msra.mxu0 0.0
    %1767 = vmatprep.subr.mxu0 0.0
    %1768 = vmatpush1.msra.mxu0 0.0
    %1769 = vmatprep.subr.mxu0 0.0
    %1770 = vmatpush1.msra.mxu0 0.0
    %1771 = vmatprep.subr.mxu0 0.0
    %1772 = vmatpush1.msra.mxu0 0.0
    %1773 = vmatprep.subr.mxu0 0.0
    %1774 = vmatpush1.msra.mxu0 0.0
    %1775 = vmatprep.subr.mxu0 0.0
    %1776 = vmatpush1.msra.mxu0 0.0
    %1777 = vmatprep.subr.mxu0 0.0
    %1778 = vmatpush1.msra.mxu0 0.0
    %1779 = vmatprep.subr.mxu0 0.0
    %1780 = vmatpush1.msra.mxu0 0.0
    %1781 = vmatprep.subr.mxu0 0.0
    %1782 = vmatpush1.msra.mxu0 0.0
    %1783 = vmatprep.subr.mxu0 0.0
    %1784 = vmatpush1.msra.mxu0 0.0
    %1785 = vmatprep.subr.mxu0 0.0
    %1786 = vmatpush1.msra.mxu0 0.0
    %1787 = vmatprep.subr.mxu0 0.0
    %1788 = vmatpush1.msra.mxu0 0.0
    %1789 = vmatprep.subr.mxu0 0.0
    %1790 = vmatpush1.msra.mxu0 0.0
    %1791 = vmatprep.subr.mxu0 0.0
    %1792 = vmatpush1.msra.mxu0 0.0
    %1793 = vmatprep.mubr.f32.mxu0 0.0
    %1794 = vmatmul.mubr.f32.gmra.mrb[0].mxu0 %v1727
    %v1795 = vpop.f32.mrb[0].mxu0
    %v1796 = vadd.f32 %v1723, %v1795
    %v1797 = vpop.f32.mrb[0].mxu0
    %1798 = vdwg.mxu0
    %v1799 = vld [vmem:[%s9] sm:$0x1]
    %v1801 = vlaneseq
    %v1802 = vshrl.u32 %v1801, 7
    %v1803 = vsub.s32 0, %v1802
    %v1804 = vrot.slane %v1799, %v1803
    %v1806 = vadd.f32 %v1796, %v1804
    %vm1807 = vcmask 39936
    %v1808 = vsel %vm1807, %v1806, -inf
    %1809 = vmax.xlane.f32.xlu0 %v1808
    %v1810 = vpop.xlane.xlu0 %1809
    %v1811 = vsub.f32 %v1806, %v1810
    %v1812 = vmul.f32 %v1811, 1.442695
    %v1813 = vpow.pop %v1812
    %v1814 = vsel %vm1807, %v1813, 0.0
    %1815 = vadd.xlane.f32.xlu0 %v1814
    %v1816 = vpop.xlane.xlu0 %1815
    %v1817 = vlog2.pop %v1816
    %v1818 = vmul.f32 %v1817, 0.6931472
    %v1819 = vadd.f32 %v1810, %v1818
    %v1820 = vsub.f32 %v1806, %v1819
    %vm1821 = vcmask 33792
    %1822 = vst.msk [vmem:[#allocation13] sm:$0x3] %vm1821, %v1820
    // Predicated region
    $region58: #{bilstm_forward_fused.1} parent=1 // pred_check
      _
    $region59: #{bilstm_forward_fused.1} parent=1 // pred_check_branch
      %1824 = sbr.rel (0) target = $region61
    $region60: #{bilstm_forward_fused.1} parent=1 // pred_region
      %s1826 = ssub.s32 32, 32
      %1827 = vsyncadd [#allocation7], %s1826
      %s1829 = sshll.u32 [#allocation13], 4
      %s1830 = int_to_ptr.vmem [resolvable:$true] %s1829
      %1832 = dma.vmem_to_hbm [thread:$0]  %s1830, 32, %s10, [#allocation7]
    $region61: #{bilstm_forward_fused.1} parent=1 // pred_fallthru
      _
    // Predicated region
    $region62: #{bilstm_forward_fused.1} parent=1 // pred_check
      _
    $region63: #{bilstm_forward_fused.1} parent=1 // pred_check_branch
      %1834 = sbr.rel (0) target = $region65
    $region64: #{bilstm_forward_fused.1} parent=1 // pred_region
      %1835 = dma.done [#allocation7], 32
    $region65: #{bilstm_forward_fused.1} parent=1 // pred_fallthru
      _
    %1836 = vsyncpa [#allocation6], 1
    %1837 = vsyncpa [#allocation9], 1
    %1838 = vsyncpa [#allocation12], 1
    %1839 = vsyncpa [#allocation7], 1

</llo_original>
